<compile_context>
chip_gen: v7x
topology: tpu7x:2x2x1
jax: 0.10.0
libtpu: 0.0.40
codegen_flags: <defaults>
</compile_context>

<pallas_src>
import jax
import jax.numpy as jnp
from jax import lax
from jax.experimental import pallas as pl
from jax.experimental.pallas import tpu as pltpu


def text_sentiment_kernel(text_ref, starts_ref, ends_ref,    # int32 VMEM
                          emb_ref, wf_ref, bf_ref,           # weights VMEM
                          out_ref):                          # f32 VMEM (TB, Cp)
    TB = out_ref.shape[0]
    T = text_ref.shape[1]
    V = emb_ref.shape[0]
    mxu_dtype = emb_ref.dtype

    # --- bag membership (TB, T): 1 where starts[b] <= t < ends[b] ------------
    iota_t = lax.broadcasted_iota(jnp.int32, (TB, T), 1)
    starts = starts_ref[...]                                  # (TB, 1)
    ends = ends_ref[...]                                      # (TB, 1)
    in_bag = ((iota_t >= starts) & (iota_t < ends)).astype(mxu_dtype)
    # Guard empty / padded bags (matches modern EmbeddingBag zero-fill).
    inv_cnt = 1.0 / jnp.maximum((ends - starts).astype(jnp.float32), 1.0)

    # --- vocab-major token one-hot (V, T): onehot[v, t] = (text[t] == v) -----
    iota_v = lax.broadcasted_iota(jnp.int32, (V, T), 0)
    onehot_vt = (text_ref[...] == iota_v).astype(mxu_dtype)   # (V, T)

    # --- histogram-first pooling ---------------------------------------------
    # hist[b, v] = #{t in bag b : text[t] == v}  (contraction over T, rhs^T)
    hist = lax.dot_general(in_bag, onehot_vt,
                           (((1,), (1,)), ((), ())),
                           preferred_element_type=jnp.float32)        # (TB, V)
    pooled = jnp.dot(hist.astype(mxu_dtype), emb_ref[...],
                     preferred_element_type=jnp.float32) * inv_cnt    # (TB, D)

    # --- fused classifier: pooled @ W_fused + b_fused ------------------------
    logits = jnp.dot(pooled.astype(wf_ref.dtype), wf_ref[...],
                     preferred_element_type=jnp.float32) + bf_ref[...]
    out_ref[...] = logits.astype(out_ref.dtype)


def _run_pallas(text_p, starts, ends, emb_p, wf_p, bf_p, *,
                batch_tile, n_tiles, T_pad, C_pad, vmem_limit,
                single_buffer_invariants):
    V, D = emb_p.shape

    def invariant_spec(shape):
        # Block index never changes across the grid -> one buffer is enough.
        if single_buffer_invariants:
            return pl.BlockSpec(shape, lambda i: (0, 0),
                                pipeline_mode=pl.Buffered(1))
        return pl.BlockSpec(shape, lambda i: (0, 0))

    grid_spec = pltpu.PrefetchScalarGridSpec(
        num_scalar_prefetch=0,
        grid=(n_tiles,),
        in_specs=[
            invariant_spec((1, T_pad)),                        # token ids
            pl.BlockSpec((batch_tile, 1), lambda i: (i, 0)),   # bag starts
            pl.BlockSpec((batch_tile, 1), lambda i: (i, 0)),   # bag ends
            invariant_spec((V, D)),                            # embedding table
            invariant_spec((D, C_pad)),                        # fused weight
            invariant_spec((1, C_pad)),                        # fused bias
        ],
        out_specs=pl.BlockSpec((batch_tile, C_pad), lambda i: (i, 0)),
    )

    return pl.pallas_call(
        text_sentiment_kernel,
        out_shape=jax.ShapeDtypeStruct((n_tiles * batch_tile, C_pad),
                                       jnp.float32),
        grid_spec=grid_spec,
        compiler_params=pltpu.CompilerParams(
            dimension_semantics=("parallel",),
            vmem_limit_bytes=vmem_limit),
    )(text_p, starts, ends, emb_p, wf_p, bf_p)


def text_sentiment_forward(text, offsets, emb_w, fc_w, fc_b, fc2_w, fc2_b,
                           *, batch_tile=128, weights_dtype=jnp.float32):
    T = int(text.shape[0])
    B = int(offsets.shape[0])
    V, D = emb_w.shape
    C = int(fc2_w.shape[0])
    assert batch_tile % 8 == 0

    # Fuse the two linears (exact up to fp32 rounding; no nonlinearity between).
    w_fused = (fc_w.T @ fc2_w.T).astype(jnp.float32)           # (D, C)
    b_fused = (fc_b @ fc2_w.T + fc2_b).astype(jnp.float32)     # (C,)

    # Lane/sublane-dense padding.
    C_pad = 128
    B_pad = pl.cdiv(B, batch_tile) * batch_tile
    n_tiles = B_pad // batch_tile
    T_pad = pl.cdiv(max(T, 1), 128) * 128

    emb_p = emb_w.astype(weights_dtype)
    w_fused_p = jnp.zeros((D, C_pad), weights_dtype).at[:, :C].set(
        w_fused.astype(weights_dtype))
    b_fused_p = jnp.zeros((1, C_pad), jnp.float32).at[0, :C].set(b_fused)

    # Per-bag [start, end) absolute token positions; padded bags are empty.
    offs = offsets.astype(jnp.int32)
    starts = jnp.zeros((B_pad, 1), jnp.int32).at[:B, 0].set(offs)
    ends = jnp.zeros((B_pad, 1), jnp.int32).at[:B, 0].set(
        jnp.concatenate([offs[1:], jnp.array([T], jnp.int32)]))

    # Lane-dense token ids; out-of-vocab sentinel -> all-zero one-hot column.
    text_p = jnp.full((1, T_pad), V, jnp.int32).at[0, :T].set(
        text.astype(jnp.int32))

    # Explicit VMEM budget (covers buffers + in-kernel temporaries, with slack).
    w_itm = jnp.dtype(weights_dtype).itemsize
    est_vmem = (
        T_pad * 4 + V * D * w_itm + D * C_pad * w_itm + C_pad * 4
        + 2 * 2 * batch_tile * 4                 # starts/ends, double buffered
        + 2 * batch_tile * C_pad * 4             # output, double buffered
        + batch_tile * T_pad * w_itm             # in_bag
        + V * T_pad * w_itm                      # one-hot
        + batch_tile * (V + D + C_pad) * 4)      # hist / pooled / logits
    vmem_limit = int(min(max(4 * est_vmem, 8 << 20), 32 << 20))

    kwargs = dict(batch_tile=batch_tile, n_tiles=n_tiles, T_pad=T_pad,
                  C_pad=C_pad, vmem_limit=vmem_limit)
    try:
        out_p = _run_pallas(text_p, starts, ends, emb_p, w_fused_p, b_fused_p,
                            single_buffer_invariants=True, **kwargs)
    except Exception:
        # Fallback if pipeline_mode=pl.Buffered(1) is rejected by this JAX.
        out_p = _run_pallas(text_p, starts, ends, emb_p, w_fused_p, b_fused_p,
                            single_buffer_invariants=False, **kwargs)

    return out_p[:B, :C]


def ref_forward(text, offsets, emb_w, fc_w, fc_b, fc2_w, fc2_b):
    """Pure-JAX reference mirroring the PyTorch module (EmbeddingBag mean)."""
    n = int(text.shape[0])
    B = int(offsets.shape[0])
    offs = [int(v) for v in offsets] + [n]
    pooled = jnp.stack(
        [emb_w[text[offs[b]:offs[b + 1]]].mean(axis=0) for b in range(B)])
    h = pooled @ fc_w.T + fc_b
    return h @ fc2_w.T + fc2_b


if __name__ == "__main__":
    # Module hyperparameters (small, consistent with the PyTorch __init__).
    vocab_size, embed_dim, num_class = 32, 32, 4
    batch, total_tokens = 2, 8

    key = jax.random.PRNGKey(0)
    k_emb, k_fc, k_fc2, k_text = jax.random.split(key, 4)

    initrange = 0.5
    emb_w = jax.random.uniform(k_emb, (vocab_size, embed_dim), jnp.float32,
                               -initrange, initrange)
    fc_w = jax.random.uniform(k_fc, (embed_dim, embed_dim), jnp.float32,
                              -initrange, initrange)
    fc_b = jnp.zeros((embed_dim,), jnp.float32)
    fc2_w = jax.random.uniform(k_fc2, (num_class, embed_dim), jnp.float32,
                               -initrange, initrange)
    fc2_b = jnp.zeros((num_class,), jnp.float32)

    # Flat token ids + per-bag start offsets (bag sizes 3 and 5).
    text = jax.random.randint(k_text, (total_tokens,), 0, vocab_size,
                              dtype=jnp.int32)
    offsets = jnp.array([0, 3], dtype=jnp.int32)

    expected = ref_forward(text, offsets, emb_w, fc_w, fc_b, fc2_w, fc2_b)

    # fp32 weights: matches the PyTorch module numerics (up to fusion rounding).
    out = text_sentiment_forward(text, offsets, emb_w, fc_w, fc_b, fc2_w, fc2_b)
    out = jax.block_until_ready(out)
    assert out.shape == (batch, num_class)
    assert jnp.allclose(out, expected, atol=1e-4, rtol=1e-4), (
        float(jnp.max(jnp.abs(out - expected))))

    # bf16 table/fused-weight fast path (v6e/v7x): deliberate accuracy
    # trade-off, fp32 accumulation retained, validated at a looser tolerance.
    out_bf16 = text_sentiment_forward(text, offsets, emb_w, fc_w, fc_b,
                                      fc2_w, fc2_b,
                                      weights_dtype=jnp.bfloat16)
    out_bf16 = jax.block_until_ready(out_bf16)
    assert out_bf16.shape == (batch, num_class)
    assert jnp.allclose(out_bf16, expected, atol=5e-2, rtol=5e-2), (
        float(jnp.max(jnp.abs(out_bf16 - expected))))

    print("KERNEL_OK")
</pallas_src>

<mosaic_0001>
module attributes {stable_mosaic.version = 11 : i64} {
  func.func @text_sentiment_kernel(%arg0: i32, %arg1: memref<1x128xi32, #tpu.memory_space<vmem>>, %arg2: memref<128x1xi32, #tpu.memory_space<vmem>>, %arg3: memref<128x1xi32, #tpu.memory_space<vmem>>, %arg4: memref<32x32xf32, #tpu.memory_space<vmem>>, %arg5: memref<32x128xf32, #tpu.memory_space<vmem>>, %arg6: memref<1x128xf32, #tpu.memory_space<vmem>>, %arg7: memref<128x128xf32, #tpu.memory_space<vmem>>) attributes {dimension_semantics = [#tpu.dimension_semantics<parallel>], iteration_bounds = array<i64: 1>, scalar_prefetch = 0 : i64, scratch_operands = 0 : i64, tpu.core_type = #tpu.core_type<tc>, window_params = [{pipeline_mode = #tpu.pipeline_mode<synchronous>, transform_indices = @transform_0, window_bounds = array<i64: 1, 128>}, {transform_indices = @transform_1, window_bounds = array<i64: 128, 1>}, {transform_indices = @transform_2, window_bounds = array<i64: 128, 1>}, {pipeline_mode = #tpu.pipeline_mode<synchronous>, transform_indices = @transform_3, window_bounds = array<i64: 32, 32>}, {pipeline_mode = #tpu.pipeline_mode<synchronous>, transform_indices = @transform_4, window_bounds = array<i64: 32, 128>}, {pipeline_mode = #tpu.pipeline_mode<synchronous>, transform_indices = @transform_5, window_bounds = array<i64: 1, 128>}, {transform_indices = @transform_6, window_bounds = array<i64: 128, 128>}]} {
    %0 = tpu.iota {dimensions = array<i32: 1>} : vector<128x128xi32>
    %c0 = arith.constant 0 : index
    %c0_0 = arith.constant 0 : index
    %1 = vector.load %arg2[%c0, %c0_0] : memref<128x1xi32, #tpu.memory_space<vmem>>, vector<128x1xi32>
    %c0_1 = arith.constant 0 : index
    %c0_2 = arith.constant 0 : index
    %2 = vector.load %arg3[%c0_1, %c0_2] : memref<128x1xi32, #tpu.memory_space<vmem>>, vector<128x1xi32>
    %3 = vector.broadcast %1 : vector<128x1xi32> to vector<128x128xi32>
    %4 = arith.cmpi sge, %0, %3 : vector<128x128xi32>
    %5 = vector.broadcast %2 : vector<128x1xi32> to vector<128x128xi32>
    %6 = arith.cmpi slt, %0, %5 : vector<128x128xi32>
    %7 = arith.andi %4, %6 : vector<128x128xi1>
    %8 = arith.extui %7 : vector<128x128xi1> to vector<128x128xi32>
    %9 = arith.sitofp %8 : vector<128x128xi32> to vector<128x128xf32>
    %10 = arith.subi %2, %1 : vector<128x1xi32>
    %11 = arith.sitofp %10 : vector<128x1xi32> to vector<128x1xf32>
    %cst = arith.constant 1.000000e+00 : f32
    %12 = vector.broadcast %cst : f32 to vector<128x1xf32>
    %13 = arith.maximumf %11, %12 : vector<128x1xf32>
    %cst_3 = arith.constant 1.000000e+00 : f32
    %14 = vector.broadcast %cst_3 : f32 to vector<128x1xf32>
    %15 = arith.divf %14, %13 : vector<128x1xf32>
    %16 = tpu.iota {dimensions = array<i32: 0>} : vector<32x128xi32>
    %c0_4 = arith.constant 0 : index
    %c0_5 = arith.constant 0 : index
    %17 = vector.load %arg1[%c0_4, %c0_5] : memref<1x128xi32, #tpu.memory_space<vmem>>, vector<1x128xi32>
    %18 = vector.broadcast %17 : vector<1x128xi32> to vector<32x128xi32>
    %19 = arith.cmpi eq, %18, %16 : vector<32x128xi32>
    %20 = arith.extui %19 : vector<32x128xi1> to vector<32x128xi32>
    %21 = arith.sitofp %20 : vector<32x128xi32> to vector<32x128xf32>
    %cst_6 = arith.constant dense<0.000000e+00> : vector<128x32xf32>
    %22 = tpu.matmul %9, %21, %cst_6 {dimension_numbers = #tpu.dot_dimension_numbers<[1], [1], [0], [0], [0, 0, 1, 0], [], []>} : vector<128x128xf32>, vector<32x128xf32>, vector<128x32xf32> -> vector<128x32xf32>
    %c0_7 = arith.constant 0 : index
    %c0_8 = arith.constant 0 : index
    %23 = vector.load %arg4[%c0_7, %c0_8] : memref<32x32xf32, #tpu.memory_space<vmem>>, vector<32x32xf32>
    %cst_9 = arith.constant dense<0.000000e+00> : vector<128x32xf32>
    %24 = tpu.matmul %22, %23, %cst_9 {dimension_numbers = #tpu.dot_dimension_numbers<[1], [0], [0], [1], [0, 0, 1, 1], [], []>} : vector<128x32xf32>, vector<32x32xf32>, vector<128x32xf32> -> vector<128x32xf32>
    %25 = vector.broadcast %15 : vector<128x1xf32> to vector<128x32xf32>
    %26 = arith.mulf %24, %25 : vector<128x32xf32>
    %c0_10 = arith.constant 0 : index
    %c0_11 = arith.constant 0 : index
    %27 = vector.load %arg5[%c0_10, %c0_11] : memref<32x128xf32, #tpu.memory_space<vmem>>, vector<32x128xf32>
    %cst_12 = arith.constant dense<0.000000e+00> : vector<128x128xf32>
    %28 = tpu.matmul %26, %27, %cst_12 {dimension_numbers = #tpu.dot_dimension_numbers<[1], [0], [0], [1], [0, 0, 1, 1], [], []>} : vector<128x32xf32>, vector<32x128xf32>, vector<128x128xf32> -> vector<128x128xf32>
    %c0_13 = arith.constant 0 : index
    %c0_14 = arith.constant 0 : index
    %29 = vector.load %arg6[%c0_13, %c0_14] : memref<1x128xf32, #tpu.memory_space<vmem>>, vector<1x128xf32>
    %30 = vector.broadcast %29 : vector<1x128xf32> to vector<128x128xf32>
    %31 = arith.addf %28, %30 : vector<128x128xf32>
    %c0_15 = arith.constant 0 : index
    %c0_16 = arith.constant 0 : index
    %32 = vector.load %arg7[%c0_15, %c0_16] : memref<128x128xf32, #tpu.memory_space<vmem>>, vector<128x128xf32>
    tpu.vector_store %arg7[%c0_15, %c0_16], %31 {strides = array<i32>} : memref<128x128xf32, #tpu.memory_space<vmem>>, vector<128x128xf32>,
    return
  }
  func.func @transform_0(%arg0: i32) -> (i32, i32) {
    %c0_i32 = arith.constant 0 : i32
    %c0_i32_0 = arith.constant 0 : i32
    %c0_i32_1 = arith.constant 0 : i32
    return %c0_i32, %c0_i32_0 : i32, i32
  }
  func.func @transform_1(%arg0: i32) -> (i32, i32) {
    %c0_i32 = arith.constant 0 : i32
    %c0_i32_0 = arith.constant 0 : i32
    return %arg0, %c0_i32 : i32, i32
  }
  func.func @transform_2(%arg0: i32) -> (i32, i32) {
    %c0_i32 = arith.constant 0 : i32
    %c0_i32_0 = arith.constant 0 : i32
    return %arg0, %c0_i32 : i32, i32
  }
  func.func @transform_3(%arg0: i32) -> (i32, i32) {
    %c0_i32 = arith.constant 0 : i32
    %c0_i32_0 = arith.constant 0 : i32
    %c0_i32_1 = arith.constant 0 : i32
    return %c0_i32, %c0_i32_0 : i32, i32
  }
  func.func @transform_4(%arg0: i32) -> (i32, i32) {
    %c0_i32 = arith.constant 0 : i32
    %c0_i32_0 = arith.constant 0 : i32
    %c0_i32_1 = arith.constant 0 : i32
    return %c0_i32, %c0_i32_0 : i32, i32
  }
  func.func @transform_5(%arg0: i32) -> (i32, i32) {
    %c0_i32 = arith.constant 0 : i32
    %c0_i32_0 = arith.constant 0 : i32
    %c0_i32_1 = arith.constant 0 : i32
    return %c0_i32, %c0_i32_0 : i32, i32
  }
  func.func @transform_6(%arg0: i32) -> (i32, i32) {
    %c0_i32 = arith.constant 0 : i32
    %c0_i32_0 = arith.constant 0 : i32
    return %arg0, %c0_i32 : i32, i32
  }
}

module attributes {stable_mosaic.version = 11 : i64} {
  func.func @text_sentiment_kernel(%arg0: i32, %arg1: memref<1x128xi32, #tpu.memory_space<vmem>>, %arg2: memref<128x1xi32, #tpu.memory_space<vmem>>, %arg3: memref<128x1xi32, #tpu.memory_space<vmem>>, %arg4: memref<32x32xf32, #tpu.memory_space<vmem>>, %arg5: memref<32x128xf32, #tpu.memory_space<vmem>>, %arg6: memref<1x128xf32, #tpu.memory_space<vmem>>, %arg7: memref<128x128xf32, #tpu.memory_space<vmem>>) attributes {dimension_semantics = [#tpu.dimension_semantics<parallel>], iteration_bounds = array<i64: 1>, scalar_prefetch = 0 : i64, scratch_operands = 0 : i64, tpu.core_type = #tpu.core_type<tc>, window_params = [{pipeline_mode = #tpu.pipeline_mode<synchronous>, transform_indices = @transform_0, window_bounds = array<i64: 1, 128>}, {transform_indices = @transform_1, window_bounds = array<i64: 128, 1>}, {transform_indices = @transform_2, window_bounds = array<i64: 128, 1>}, {pipeline_mode = #tpu.pipeline_mode<synchronous>, transform_indices = @transform_3, window_bounds = array<i64: 32, 32>}, {pipeline_mode = #tpu.pipeline_mode<synchronous>, transform_indices = @transform_4, window_bounds = array<i64: 32, 128>}, {pipeline_mode = #tpu.pipeline_mode<synchronous>, transform_indices = @transform_5, window_bounds = array<i64: 1, 128>}, {transform_indices = @transform_6, window_bounds = array<i64: 128, 128>}]} {
    %0 = tpu.iota {dimensions = array<i32: 1>} : vector<128x128xi32>
    %c0 = arith.constant 0 : index
    %c0_0 = arith.constant 0 : index
    %1 = vector.load %arg2[%c0, %c0_0] : memref<128x1xi32, #tpu.memory_space<vmem>>, vector<128x1xi32>
    %c0_1 = arith.constant 0 : index
    %c0_2 = arith.constant 0 : index
    %2 = vector.load %arg3[%c0_1, %c0_2] : memref<128x1xi32, #tpu.memory_space<vmem>>, vector<128x1xi32>
    %3 = vector.broadcast %1 : vector<128x1xi32> to vector<128x128xi32>
    %4 = arith.cmpi sge, %0, %3 : vector<128x128xi32>
    %5 = vector.broadcast %2 : vector<128x1xi32> to vector<128x128xi32>
    %6 = arith.cmpi slt, %0, %5 : vector<128x128xi32>
    %7 = arith.andi %4, %6 : vector<128x128xi1>
    %8 = arith.extui %7 : vector<128x128xi1> to vector<128x128xi32>
    %9 = arith.sitofp %8 : vector<128x128xi32> to vector<128x128xf32>
    %10 = arith.subi %2, %1 : vector<128x1xi32>
    %11 = arith.sitofp %10 : vector<128x1xi32> to vector<128x1xf32>
    %cst = arith.constant 1.000000e+00 : f32
    %12 = vector.broadcast %cst : f32 to vector<128x1xf32>
    %13 = arith.maximumf %11, %12 : vector<128x1xf32>
    %cst_3 = arith.constant 1.000000e+00 : f32
    %14 = vector.broadcast %cst_3 : f32 to vector<128x1xf32>
    %15 = arith.divf %14, %13 : vector<128x1xf32>
    %16 = tpu.iota {dimensions = array<i32: 0>} : vector<32x128xi32>
    %c0_4 = arith.constant 0 : index
    %c0_5 = arith.constant 0 : index
    %17 = vector.load %arg1[%c0_4, %c0_5] : memref<1x128xi32, #tpu.memory_space<vmem>>, vector<1x128xi32>
    %18 = vector.broadcast %17 : vector<1x128xi32> to vector<32x128xi32>
    %19 = arith.cmpi eq, %18, %16 : vector<32x128xi32>
    %20 = arith.extui %19 : vector<32x128xi1> to vector<32x128xi32>
    %21 = arith.sitofp %20 : vector<32x128xi32> to vector<32x128xf32>
    %cst_6 = arith.constant dense<0.000000e+00> : vector<128x32xf32>
    %22 = tpu.matmul %9, %21, %cst_6 {dimension_numbers = #tpu.dot_dimension_numbers<[1], [1], [0], [0], [0, 0, 1, 0], [], []>} : vector<128x128xf32>, vector<32x128xf32>, vector<128x32xf32> -> vector<128x32xf32>
    %c0_7 = arith.constant 0 : index
    %c0_8 = arith.constant 0 : index
    %23 = vector.load %arg4[%c0_7, %c0_8] : memref<32x32xf32, #tpu.memory_space<vmem>>, vector<32x32xf32>
    %cst_9 = arith.constant dense<0.000000e+00> : vector<128x32xf32>
    %24 = tpu.matmul %22, %23, %cst_9 {dimension_numbers = #tpu.dot_dimension_numbers<[1], [0], [0], [1], [0, 0, 1, 1], [], []>} : vector<128x32xf32>, vector<32x32xf32>, vector<128x32xf32> -> vector<128x32xf32>
    %25 = vector.broadcast %15 : vector<128x1xf32> to vector<128x32xf32>
    %26 = arith.mulf %24, %25 : vector<128x32xf32>
    %c0_10 = arith.constant 0 : index
    %c0_11 = arith.constant 0 : index
    %27 = vector.load %arg5[%c0_10, %c0_11] : memref<32x128xf32, #tpu.memory_space<vmem>>, vector<32x128xf32>
    %cst_12 = arith.constant dense<0.000000e+00> : vector<128x128xf32>
    %28 = tpu.matmul %26, %27, %cst_12 {dimension_numbers = #tpu.dot_dimension_numbers<[1], [0], [0], [1], [0, 0, 1, 1], [], []>} : vector<128x32xf32>, vector<32x128xf32>, vector<128x128xf32> -> vector<128x128xf32>
    %c0_13 = arith.constant 0 : index
    %c0_14 = arith.constant 0 : index
    %29 = vector.load %arg6[%c0_13, %c0_14] : memref<1x128xf32, #tpu.memory_space<vmem>>, vector<1x128xf32>
    %30 = vector.broadcast %29 : vector<1x128xf32> to vector<128x128xf32>
    %31 = arith.addf %28, %30 : vector<128x128xf32>
    %c0_15 = arith.constant 0 : index
    %c0_16 = arith.constant 0 : index
    %32 = vector.load %arg7[%c0_15, %c0_16] : memref<128x128xf32, #tpu.memory_space<vmem>>, vector<128x128xf32>
    tpu.vector_store %arg7[%c0_15, %c0_16], %31 {strides = array<i32>} : memref<128x128xf32, #tpu.memory_space<vmem>>, vector<128x128xf32>,
    return
  }
  func.func @transform_0(%arg0: i32) -> (i32, i32) {
    %c0_i32 = arith.constant 0 : i32
    %c0_i32_0 = arith.constant 0 : i32
    %c0_i32_1 = arith.constant 0 : i32
    return %c0_i32, %c0_i32_0 : i32, i32
  }
  func.func @transform_1(%arg0: i32) -> (i32, i32) {
    %c0_i32 = arith.constant 0 : i32
    %c0_i32_0 = arith.constant 0 : i32
    return %arg0, %c0_i32 : i32, i32
  }
  func.func @transform_2(%arg0: i32) -> (i32, i32) {
    %c0_i32 = arith.constant 0 : i32
    %c0_i32_0 = arith.constant 0 : i32
    return %arg0, %c0_i32 : i32, i32
  }
  func.func @transform_3(%arg0: i32) -> (i32, i32) {
    %c0_i32 = arith.constant 0 : i32
    %c0_i32_0 = arith.constant 0 : i32
    %c0_i32_1 = arith.constant 0 : i32
    return %c0_i32, %c0_i32_0 : i32, i32
  }
  func.func @transform_4(%arg0: i32) -> (i32, i32) {
    %c0_i32 = arith.constant 0 : i32
    %c0_i32_0 = arith.constant 0 : i32
    %c0_i32_1 = arith.constant 0 : i32
    return %c0_i32, %c0_i32_0 : i32, i32
  }
  func.func @transform_5(%arg0: i32) -> (i32, i32) {
    %c0_i32 = arith.constant 0 : i32
    %c0_i32_0 = arith.constant 0 : i32
    %c0_i32_1 = arith.constant 0 : i32
    return %c0_i32, %c0_i32_0 : i32, i32
  }
  func.func @transform_6(%arg0: i32) -> (i32, i32) {
    %c0_i32 = arith.constant 0 : i32
    %c0_i32_0 = arith.constant 0 : i32
    return %arg0, %c0_i32 : i32, i32
  }
}

</mosaic_0001>

<llo_original>
// kernel: tpu_custom_call.1
$region0: #{tpu_custom_call.1}
  #allocation0 [shape = 'u32[]', space=smem, size = 0x4, offset = 0x4, fixed_abs, tag = 'smem constant byte address 0x4 - core index']
  #allocation1 [shape = 'u32[144,128]{1,0:T(1,128)}', space=vmem, size = 0x12000, scoped, tag = 'internal scratch']
  %s0 = inlined_call_operand.vmem [shape: s32[1,128], index: 0, kind: input, shape index: {}]
  %s1 = inlined_call_operand.vmem [shape: s32[128,1], index: 1, kind: input, shape index: {}]
  %s2 = inlined_call_operand.vmem [shape: s32[128,1], index: 2, kind: input, shape index: {}]
  %s3 = inlined_call_operand.vmem [shape: f32[32,32], index: 3, kind: input, shape index: {}]
  %s4 = inlined_call_operand.vmem [shape: f32[32,128], index: 4, kind: input, shape index: {}]
  %s5 = inlined_call_operand.vmem [shape: f32[1,128], index: 5, kind: input, shape index: {}]
  %s6 = inlined_call_operand.hbm [shape: f32[128,128], index: 6, kind: output, shape index: {}]
  %s7 = sld [smem:[#allocation0]]
  $region34: #{tpu_custom_call.1} parent=0
    _
  %s9 = ssub.s32 1, %s7
  %s10 = scalar_select 0, %s9, %s7
  $region1: #{tpu_custom_call.1} parent=0
    #allocation2 [shape = 'u8[65536]{0}', space=vmem, size = 0x10000, scoped, tag = 'output window, operand 0, single buffered']
    #allocation3 [shape = 's32[1]{0}', space=sflag, size = 0x4, scoped, tag = 'scoped memory for tpu_custom_call.1']
    %11 = vsyncpa [#allocation3], 0
    // Predicated region
    $region2: #{tpu_custom_call.1} parent=1 // pred_check
      _
    $region3: #{tpu_custom_call.1} parent=1 // pred_check_branch
      %13 = sbr.rel (0) target = $region5
    $region4: #{tpu_custom_call.1} parent=1 // pred_region
      _
    $region5: #{tpu_custom_call.1} parent=1 // pred_fallthru
      _
    // Predicated region
    $region6: #{tpu_custom_call.1} parent=1 // pred_check
      _
    $region7: #{tpu_custom_call.1} parent=1 // pred_check_branch
      %15 = sbr.rel (0) target = $region9
    $region8: #{tpu_custom_call.1} parent=1 // pred_region
      _
    $region9: #{tpu_custom_call.1} parent=1 // pred_fallthru
      _
    // Predicated region
    $region10: #{tpu_custom_call.1} parent=1 // pred_check
      _
    $region11: #{tpu_custom_call.1} parent=1 // pred_check_branch
      %17 = sbr.rel (0) target = $region13
    $region12: #{tpu_custom_call.1} parent=1 // pred_region
      _
    $region13: #{tpu_custom_call.1} parent=1 // pred_fallthru
      _
    // Predicated region
    $region14: #{tpu_custom_call.1} parent=1 // pred_check
      _
    $region15: #{tpu_custom_call.1} parent=1 // pred_check_branch
      %19 = sbr.rel (0) target = $region17
    $region16: #{tpu_custom_call.1} parent=1 // pred_region
      _
    $region17: #{tpu_custom_call.1} parent=1 // pred_fallthru
      _
    // Predicated region
    $region18: #{tpu_custom_call.1} parent=1 // pred_check
      _
    $region19: #{tpu_custom_call.1} parent=1 // pred_check_branch
      %21 = sbr.rel (0) target = $region21
    $region20: #{tpu_custom_call.1} parent=1 // pred_region
      _
    $region21: #{tpu_custom_call.1} parent=1 // pred_fallthru
      _
    // Predicated region
    $region22: #{tpu_custom_call.1} parent=1 // pred_check
      _
    $region23: #{tpu_custom_call.1} parent=1 // pred_check_branch
      %23 = sbr.rel (0) target = $region25
    $region24: #{tpu_custom_call.1} parent=1 // pred_region
      _
    $region25: #{tpu_custom_call.1} parent=1 // pred_fallthru
      _
    %v24 = vlaneseq
    %v25 = vand.u32 %v24, 127
    %v26 = vld [vmem:[%s1] sm:$0xff]
    %v27 = vld [vmem:[%s1 + $0x8] sm:$0xff]
    %v28 = vld [vmem:[%s1 + $0x10] sm:$0xff]
    %v29 = vld [vmem:[%s1 + $0x18] sm:$0xff]
    %v30 = vld [vmem:[%s1 + $0x20] sm:$0xff]
    %v31 = vld [vmem:[%s1 + $0x28] sm:$0xff]
    %v32 = vld [vmem:[%s1 + $0x30] sm:$0xff]
    %v33 = vld [vmem:[%s1 + $0x38] sm:$0xff]
    %v34 = vld [vmem:[%s1 + $0x40] sm:$0xff]
    %v35 = vld [vmem:[%s1 + $0x48] sm:$0xff]
    %v36 = vld [vmem:[%s1 + $0x50] sm:$0xff]
    %v37 = vld [vmem:[%s1 + $0x58] sm:$0xff]
    %v38 = vld [vmem:[%s1 + $0x60] sm:$0xff]
    %v39 = vld [vmem:[%s1 + $0x68] sm:$0xff]
    %v40 = vld [vmem:[%s1 + $0x70] sm:$0xff]
    %v41 = vld [vmem:[%s1 + $0x78] sm:$0xff]
    %v42 = vld [vmem:[%s2] sm:$0xff]
    %v43 = vld [vmem:[%s2 + $0x8] sm:$0xff]
    %v44 = vld [vmem:[%s2 + $0x10] sm:$0xff]
    %v45 = vld [vmem:[%s2 + $0x18] sm:$0xff]
    %v46 = vld [vmem:[%s2 + $0x20] sm:$0xff]
    %v47 = vld [vmem:[%s2 + $0x28] sm:$0xff]
    %v48 = vld [vmem:[%s2 + $0x30] sm:$0xff]
    %v49 = vld [vmem:[%s2 + $0x38] sm:$0xff]
    %v50 = vld [vmem:[%s2 + $0x40] sm:$0xff]
    %v51 = vld [vmem:[%s2 + $0x48] sm:$0xff]
    %v52 = vld [vmem:[%s2 + $0x50] sm:$0xff]
    %v53 = vld [vmem:[%s2 + $0x58] sm:$0xff]
    %v54 = vld [vmem:[%s2 + $0x60] sm:$0xff]
    %v55 = vld [vmem:[%s2 + $0x68] sm:$0xff]
    %v56 = vld [vmem:[%s2 + $0x70] sm:$0xff]
    %v57 = vld [vmem:[%s2 + $0x78] sm:$0xff]
    %58 = vset.pattern.permute.xlu0 0
    %59 = vperm.xlu0 %58, %v26
    %v60 = vpop.permute.xlu0 %59
    %61 = vset.pattern.permute.xlu0 0
    %62 = vperm.xlu0 %61, %v27
    %v63 = vpop.permute.xlu0 %62
    %64 = vset.pattern.permute.xlu0 0
    %65 = vperm.xlu0 %64, %v28
    %v66 = vpop.permute.xlu0 %65
    %67 = vset.pattern.permute.xlu0 0
    %68 = vperm.xlu0 %67, %v29
    %v69 = vpop.permute.xlu0 %68
    %70 = vset.pattern.permute.xlu0 0
    %71 = vperm.xlu0 %70, %v30
    %v72 = vpop.permute.xlu0 %71
    %73 = vset.pattern.permute.xlu0 0
    %74 = vperm.xlu0 %73, %v31
    %v75 = vpop.permute.xlu0 %74
    %76 = vset.pattern.permute.xlu0 0
    %77 = vperm.xlu0 %76, %v32
    %v78 = vpop.permute.xlu0 %77
    %79 = vset.pattern.permute.xlu0 0
    %80 = vperm.xlu0 %79, %v33
    %v81 = vpop.permute.xlu0 %80
    %82 = vset.pattern.permute.xlu0 0
    %83 = vperm.xlu0 %82, %v34
    %v84 = vpop.permute.xlu0 %83
    %85 = vset.pattern.permute.xlu0 0
    %86 = vperm.xlu0 %85, %v35
    %v87 = vpop.permute.xlu0 %86
    %88 = vset.pattern.permute.xlu0 0
    %89 = vperm.xlu0 %88, %v36
    %v90 = vpop.permute.xlu0 %89
    %91 = vset.pattern.permute.xlu0 0
    %92 = vperm.xlu0 %91, %v37
    %v93 = vpop.permute.xlu0 %92
    %94 = vset.pattern.permute.xlu0 0
    %95 = vperm.xlu0 %94, %v38
    %v96 = vpop.permute.xlu0 %95
    %97 = vset.pattern.permute.xlu0 0
    %98 = vperm.xlu0 %97, %v39
    %v99 = vpop.permute.xlu0 %98
    %100 = vset.pattern.permute.xlu0 0
    %101 = vperm.xlu0 %100, %v40
    %v102 = vpop.permute.xlu0 %101
    %103 = vset.pattern.permute.xlu0 0
    %104 = vperm.xlu0 %103, %v41
    %v105 = vpop.permute.xlu0 %104
    %vm106 = vcmp.ge.s32.totalorder %v25, %v60
    %vm107 = vcmp.ge.s32.totalorder %v25, %v63
    %vm108 = vcmp.ge.s32.totalorder %v25, %v66
    %vm109 = vcmp.ge.s32.totalorder %v25, %v69
    %vm110 = vcmp.ge.s32.totalorder %v25, %v72
    %vm111 = vcmp.ge.s32.totalorder %v25, %v75
    %vm112 = vcmp.ge.s32.totalorder %v25, %v78
    %vm113 = vcmp.ge.s32.totalorder %v25, %v81
    %vm114 = vcmp.ge.s32.totalorder %v25, %v84
    %vm115 = vcmp.ge.s32.totalorder %v25, %v87
    %vm116 = vcmp.ge.s32.totalorder %v25, %v90
    %vm117 = vcmp.ge.s32.totalorder %v25, %v93
    %vm118 = vcmp.ge.s32.totalorder %v25, %v96
    %vm119 = vcmp.ge.s32.totalorder %v25, %v99
    %vm120 = vcmp.ge.s32.totalorder %v25, %v102
    %vm121 = vcmp.ge.s32.totalorder %v25, %v105
    %122 = vset.pattern.permute.xlu0 0
    %123 = vperm.xlu0 %122, %v42
    %v124 = vpop.permute.xlu0 %123
    %125 = vset.pattern.permute.xlu0 0
    %126 = vperm.xlu0 %125, %v43
    %v127 = vpop.permute.xlu0 %126
    %128 = vset.pattern.permute.xlu0 0
    %129 = vperm.xlu0 %128, %v44
    %v130 = vpop.permute.xlu0 %129
    %131 = vset.pattern.permute.xlu0 0
    %132 = vperm.xlu0 %131, %v45
    %v133 = vpop.permute.xlu0 %132
    %134 = vset.pattern.permute.xlu0 0
    %135 = vperm.xlu0 %134, %v46
    %v136 = vpop.permute.xlu0 %135
    %137 = vset.pattern.permute.xlu0 0
    %138 = vperm.xlu0 %137, %v47
    %v139 = vpop.permute.xlu0 %138
    %140 = vset.pattern.permute.xlu0 0
    %141 = vperm.xlu0 %140, %v48
    %v142 = vpop.permute.xlu0 %141
    %143 = vset.pattern.permute.xlu0 0
    %144 = vperm.xlu0 %143, %v49
    %v145 = vpop.permute.xlu0 %144
    %146 = vset.pattern.permute.xlu0 0
    %147 = vperm.xlu0 %146, %v50
    %v148 = vpop.permute.xlu0 %147
    %149 = vset.pattern.permute.xlu0 0
    %150 = vperm.xlu0 %149, %v51
    %v151 = vpop.permute.xlu0 %150
    %152 = vset.pattern.permute.xlu0 0
    %153 = vperm.xlu0 %152, %v52
    %v154 = vpop.permute.xlu0 %153
    %155 = vset.pattern.permute.xlu0 0
    %156 = vperm.xlu0 %155, %v53
    %v157 = vpop.permute.xlu0 %156
    %158 = vset.pattern.permute.xlu0 0
    %159 = vperm.xlu0 %158, %v54
    %v160 = vpop.permute.xlu0 %159
    %161 = vset.pattern.permute.xlu0 0
    %162 = vperm.xlu0 %161, %v55
    %v163 = vpop.permute.xlu0 %162
    %164 = vset.pattern.permute.xlu0 0
    %165 = vperm.xlu0 %164, %v56
    %v166 = vpop.permute.xlu0 %165
    %167 = vset.pattern.permute.xlu0 0
    %168 = vperm.xlu0 %167, %v57
    %v169 = vpop.permute.xlu0 %168
    %vm170 = vcmp.lt.s32.totalorder %v25, %v124
    %vm171 = vcmp.lt.s32.totalorder %v25, %v127
    %vm172 = vcmp.lt.s32.totalorder %v25, %v130
    %vm173 = vcmp.lt.s32.totalorder %v25, %v133
    %vm174 = vcmp.lt.s32.totalorder %v25, %v136
    %vm175 = vcmp.lt.s32.totalorder %v25, %v139
    %vm176 = vcmp.lt.s32.totalorder %v25, %v142
    %vm177 = vcmp.lt.s32.totalorder %v25, %v145
    %vm178 = vcmp.lt.s32.totalorder %v25, %v148
    %vm179 = vcmp.lt.s32.totalorder %v25, %v151
    %vm180 = vcmp.lt.s32.totalorder %v25, %v154
    %vm181 = vcmp.lt.s32.totalorder %v25, %v157
    %vm182 = vcmp.lt.s32.totalorder %v25, %v160
    %vm183 = vcmp.lt.s32.totalorder %v25, %v163
    %vm184 = vcmp.lt.s32.totalorder %v25, %v166
    %vm185 = vcmp.lt.s32.totalorder %v25, %v169
    %vm186 = vmand %vm106, %vm170
    %vm187 = vmand %vm107, %vm171
    %vm188 = vmand %vm108, %vm172
    %vm189 = vmand %vm109, %vm173
    %vm190 = vmand %vm110, %vm174
    %vm191 = vmand %vm111, %vm175
    %vm192 = vmand %vm112, %vm176
    %vm193 = vmand %vm113, %vm177
    %vm194 = vmand %vm114, %vm178
    %vm195 = vmand %vm115, %vm179
    %vm196 = vmand %vm116, %vm180
    %vm197 = vmand %vm117, %vm181
    %vm198 = vmand %vm118, %vm182
    %vm199 = vmand %vm119, %vm183
    %vm200 = vmand %vm120, %vm184
    %vm201 = vmand %vm121, %vm185
    %v202 = vsel %vm186, 1, 0
    %v203 = vsel %vm187, 1, 0
    %v204 = vsel %vm188, 1, 0
    %v205 = vsel %vm189, 1, 0
    %v206 = vsel %vm190, 1, 0
    %v207 = vsel %vm191, 1, 0
    %v208 = vsel %vm192, 1, 0
    %v209 = vsel %vm193, 1, 0
    %v210 = vsel %vm194, 1, 0
    %v211 = vsel %vm195, 1, 0
    %v212 = vsel %vm196, 1, 0
    %v213 = vsel %vm197, 1, 0
    %v214 = vsel %vm198, 1, 0
    %v215 = vsel %vm199, 1, 0
    %v216 = vsel %vm200, 1, 0
    %v217 = vsel %vm201, 1, 0
    %v218 = vcvt.s32.f32 %v202
    %v219 = vcvt.s32.f32 %v203
    %v220 = vcvt.s32.f32 %v204
    %v221 = vcvt.s32.f32 %v205
    %v222 = vcvt.s32.f32 %v206
    %v223 = vcvt.s32.f32 %v207
    %v224 = vcvt.s32.f32 %v208
    %v225 = vcvt.s32.f32 %v209
    %v226 = vcvt.s32.f32 %v210
    %v227 = vcvt.s32.f32 %v211
    %v228 = vcvt.s32.f32 %v212
    %v229 = vcvt.s32.f32 %v213
    %v230 = vcvt.s32.f32 %v214
    %v231 = vcvt.s32.f32 %v215
    %v232 = vcvt.s32.f32 %v216
    %v233 = vcvt.s32.f32 %v217
    %v234 = vsub.s32 %v42, %v26
    %v235 = vsub.s32 %v43, %v27
    %v236 = vsub.s32 %v44, %v28
    %v237 = vsub.s32 %v45, %v29
    %v238 = vsub.s32 %v46, %v30
    %v239 = vsub.s32 %v47, %v31
    %v240 = vsub.s32 %v48, %v32
    %v241 = vsub.s32 %v49, %v33
    %v242 = vsub.s32 %v50, %v34
    %v243 = vsub.s32 %v51, %v35
    %v244 = vsub.s32 %v52, %v36
    %v245 = vsub.s32 %v53, %v37
    %v246 = vsub.s32 %v54, %v38
    %v247 = vsub.s32 %v55, %v39
    %v248 = vsub.s32 %v56, %v40
    %v249 = vsub.s32 %v57, %v41
    %v250 = vcvt.s32.f32 %v234
    %v251 = vcvt.s32.f32 %v235
    %v252 = vcvt.s32.f32 %v236
    %v253 = vcvt.s32.f32 %v237
    %v254 = vcvt.s32.f32 %v238
    %v255 = vcvt.s32.f32 %v239
    %v256 = vcvt.s32.f32 %v240
    %v257 = vcvt.s32.f32 %v241
    %v258 = vcvt.s32.f32 %v242
    %v259 = vcvt.s32.f32 %v243
    %v260 = vcvt.s32.f32 %v244
    %v261 = vcvt.s32.f32 %v245
    %v262 = vcvt.s32.f32 %v246
    %v263 = vcvt.s32.f32 %v247
    %v264 = vcvt.s32.f32 %v248
    %v265 = vcvt.s32.f32 %v249
    %v266 = vmax.f32 %v250, 1.0
    %v267 = vmax.f32 %v251, 1.0
    %v268 = vmax.f32 %v252, 1.0
    %v269 = vmax.f32 %v253, 1.0
    %v270 = vmax.f32 %v254, 1.0
    %v271 = vmax.f32 %v255, 1.0
    %v272 = vmax.f32 %v256, 1.0
    %v273 = vmax.f32 %v257, 1.0
    %v274 = vmax.f32 %v258, 1.0
    %v275 = vmax.f32 %v259, 1.0
    %v276 = vmax.f32 %v260, 1.0
    %v277 = vmax.f32 %v261, 1.0
    %v278 = vmax.f32 %v262, 1.0
    %v279 = vmax.f32 %v263, 1.0
    %v280 = vmax.f32 %v264, 1.0
    %v281 = vmax.f32 %v265, 1.0
    %v282 = vrcp.pop %v266
    %v283 = vmul.f32 1.0, %v282
    %v284 = vrcp.pop %v267
    %v285 = vmul.f32 1.0, %v284
    %v286 = vrcp.pop %v268
    %v287 = vmul.f32 1.0, %v286
    %v288 = vrcp.pop %v269
    %v289 = vmul.f32 1.0, %v288
    %v290 = vrcp.pop %v270
    %v291 = vmul.f32 1.0, %v290
    %v292 = vrcp.pop %v271
    %v293 = vmul.f32 1.0, %v292
    %v294 = vrcp.pop %v272
    %v295 = vmul.f32 1.0, %v294
    %v296 = vrcp.pop %v273
    %v297 = vmul.f32 1.0, %v296
    %v298 = vrcp.pop %v274
    %v299 = vmul.f32 1.0, %v298
    %v300 = vrcp.pop %v275
    %v301 = vmul.f32 1.0, %v300
    %v302 = vrcp.pop %v276
    %v303 = vmul.f32 1.0, %v302
    %v304 = vrcp.pop %v277
    %v305 = vmul.f32 1.0, %v304
    %v306 = vrcp.pop %v278
    %v307 = vmul.f32 1.0, %v306
    %v308 = vrcp.pop %v279
    %v309 = vmul.f32 1.0, %v308
    %v310 = vrcp.pop %v280
    %v311 = vmul.f32 1.0, %v310
    %v312 = vrcp.pop %v281
    %v313 = vmul.f32 1.0, %v312
    %v314 = vlaneseq
    %v315 = vshrl.u32 %v314, 7
    %v316 = vadd.s32 %v315, 8
    %v317 = vadd.s32 %v315, 16
    %v318 = vadd.s32 %v315, 24
    %v319 = vld [vmem:[%s0] sm:$0x1]
    %v320 = vlaneseq
    %v321 = vshrl.u32 %v320, 7
    %v322 = vsub.s32 0, %v321
    %v323 = vrot.slane %v319, %v322
    %vm324 = vcmp.eq.s32.totalorder %v323, %v315
    %vm325 = vcmp.eq.s32.totalorder %v323, %v316
    %vm326 = vcmp.eq.s32.totalorder %v323, %v317
    %vm327 = vcmp.eq.s32.totalorder %v323, %v318
    %v328 = vsel %vm324, 1, 0
    %v329 = vsel %vm325, 1, 0
    %v330 = vsel %vm326, 1, 0
    %v331 = vsel %vm327, 1, 0
    %v332 = vcvt.s32.f32 %v328
    %v333 = vcvt.s32.f32 %v329
    %v334 = vcvt.s32.f32 %v330
    %v335 = vcvt.s32.f32 %v331
    %336 = vmatprep.subr.mxu0 0.0
    %337 = vmatpush1.xpose.msra.mxu0 %v332
    %338 = vmatprep.subr.mxu0 0.0
    %339 = vmatpush1.xpose.msra.mxu0 %v333
    %340 = vmatprep.subr.mxu0 0.0
    %341 = vmatpush1.xpose.msra.mxu0 %v334
    %342 = vmatprep.subr.mxu0 0.0
    %343 = vmatpush1.xpose.msra.mxu0 %v335
    %344 = vmatprep.subr.mxu0 0.0
    %345 = vmatpush1.xpose.msra.mxu0 0.0
    %346 = vmatprep.subr.mxu0 0.0
    %347 = vmatpush1.xpose.msra.mxu0 0.0
    %348 = vmatprep.subr.mxu0 0.0
    %349 = vmatpush1.xpose.msra.mxu0 0.0
    %350 = vmatprep.subr.mxu0 0.0
    %351 = vmatpush1.xpose.msra.mxu0 0.0
    %352 = vmatprep.subr.mxu0 0.0
    %353 = vmatpush1.xpose.msra.mxu0 0.0
    %354 = vmatprep.subr.mxu0 0.0
    %355 = vmatpush1.xpose.msra.mxu0 0.0
    %356 = vmatprep.subr.mxu0 0.0
    %357 = vmatpush1.xpose.msra.mxu0 0.0
    %358 = vmatprep.subr.mxu0 0.0
    %359 = vmatpush1.xpose.msra.mxu0 0.0
    %360 = vmatprep.subr.mxu0 0.0
    %361 = vmatpush1.xpose.msra.mxu0 0.0
    %362 = vmatprep.subr.mxu0 0.0
    %363 = vmatpush1.xpose.msra.mxu0 0.0
    %364 = vmatprep.subr.mxu0 0.0
    %365 = vmatpush1.xpose.msra.mxu0 0.0
    %366 = vmatprep.subr.mxu0 0.0
    %367 = vmatpush1.xpose.msra.mxu0 0.0
    %368 = vmatprep.subr.mxu0 0.0
    %369 = vmatpush1.xpose.msra.mxu0 0.0
    %370 = vmatprep.subr.mxu0 0.0
    %371 = vmatpush1.xpose.msra.mxu0 0.0
    %372 = vmatprep.subr.mxu0 0.0
    %373 = vmatpush1.xpose.msra.mxu0 0.0
    %374 = vmatprep.subr.mxu0 0.0
    %375 = vmatpush1.xpose.msra.mxu0 0.0
    %376 = vmatprep.subr.mxu0 0.0
    %377 = vmatpush1.xpose.msra.mxu0 0.0
    %378 = vmatprep.subr.mxu0 0.0
    %379 = vmatpush1.xpose.msra.mxu0 0.0
    %380 = vmatprep.subr.mxu0 0.0
    %381 = vmatpush1.xpose.msra.mxu0 0.0
    %382 = vmatprep.subr.mxu0 0.0
    %383 = vmatpush1.xpose.msra.mxu0 0.0
    %384 = vmatprep.subr.mxu0 0.0
    %385 = vmatpush1.xpose.msra.mxu0 0.0
    %386 = vmatprep.subr.mxu0 0.0
    %387 = vmatpush1.xpose.msra.mxu0 0.0
    %388 = vmatprep.subr.mxu0 0.0
    %389 = vmatpush1.xpose.msra.mxu0 0.0
    %390 = vmatprep.subr.mxu0 0.0
    %391 = vmatpush1.xpose.msra.mxu0 0.0
    %392 = vmatprep.subr.mxu0 0.0
    %393 = vmatpush1.xpose.msra.mxu0 0.0
    %394 = vmatprep.subr.mxu0 0.0
    %395 = vmatpush1.xpose.msra.mxu0 0.0
    %396 = vmatprep.subr.mxu0 0.0
    %397 = vmatpush1.xpose.msra.mxu0 0.0
    %398 = vmatprep.subr.mxu0 0.0
    %399 = vmatpush1.xpose.msra.mxu0 0.0
    %400 = vmatprep.mubr.f32.mxu0 0.0
    %401 = vmatmul.mubr.f32.gmra.mrb[0].mxu0 %v218
    %v402 = vpop.f32.mrb[0].mxu0
    %v403 = vadd.f32 0.0, %v402
    %v404 = vpop.f32.mrb[0].mxu0
    %405 = vmatprep.mubr.f32.mxu0 0.0
    %406 = vmatmul.mubr.f32.gmra.mrb[0].mxu0 %v219
    %v407 = vpop.f32.mrb[0].mxu0
    %v408 = vadd.f32 0.0, %v407
    %v409 = vpop.f32.mrb[0].mxu0
    %410 = vmatprep.mubr.f32.mxu0 0.0
    %411 = vmatmul.mubr.f32.gmra.mrb[0].mxu0 %v220
    %v412 = vpop.f32.mrb[0].mxu0
    %v413 = vadd.f32 0.0, %v412
    %v414 = vpop.f32.mrb[0].mxu0
    %415 = vmatprep.mubr.f32.mxu0 0.0
    %416 = vmatmul.mubr.f32.gmra.mrb[0].mxu0 %v221
    %v417 = vpop.f32.mrb[0].mxu0
    %v418 = vadd.f32 0.0, %v417
    %v419 = vpop.f32.mrb[0].mxu0
    %420 = vmatprep.mubr.f32.mxu0 0.0
    %421 = vmatmul.mubr.f32.gmra.mrb[0].mxu0 %v222
    %v422 = vpop.f32.mrb[0].mxu0
    %v423 = vadd.f32 0.0, %v422
    %v424 = vpop.f32.mrb[0].mxu0
    %425 = vmatprep.mubr.f32.mxu0 0.0
    %426 = vmatmul.mubr.f32.gmra.mrb[0].mxu0 %v223
    %v427 = vpop.f32.mrb[0].mxu0
    %v428 = vadd.f32 0.0, %v427
    %v429 = vpop.f32.mrb[0].mxu0
    %430 = vmatprep.mubr.f32.mxu0 0.0
    %431 = vmatmul.mubr.f32.gmra.mrb[0].mxu0 %v224
    %v432 = vpop.f32.mrb[0].mxu0
    %v433 = vadd.f32 0.0, %v432
    %v434 = vpop.f32.mrb[0].mxu0
    %435 = vmatprep.mubr.f32.mxu0 0.0
    %436 = vmatmul.mubr.f32.gmra.mrb[0].mxu0 %v225
    %v437 = vpop.f32.mrb[0].mxu0
    %v438 = vadd.f32 0.0, %v437
    %v439 = vpop.f32.mrb[0].mxu0
    %440 = vmatprep.mubr.f32.mxu0 0.0
    %441 = vmatmul.mubr.f32.gmra.mrb[0].mxu0 %v226
    %v442 = vpop.f32.mrb[0].mxu0
    %v443 = vadd.f32 0.0, %v442
    %v444 = vpop.f32.mrb[0].mxu0
    %445 = vmatprep.mubr.f32.mxu0 0.0
    %446 = vmatmul.mubr.f32.gmra.mrb[0].mxu0 %v227
    %v447 = vpop.f32.mrb[0].mxu0
    %v448 = vadd.f32 0.0, %v447
    %v449 = vpop.f32.mrb[0].mxu0
    %450 = vmatprep.mubr.f32.mxu0 0.0
    %451 = vmatmul.mubr.f32.gmra.mrb[0].mxu0 %v228
    %v452 = vpop.f32.mrb[0].mxu0
    %v453 = vadd.f32 0.0, %v452
    %v454 = vpop.f32.mrb[0].mxu0
    %455 = vmatprep.mubr.f32.mxu0 0.0
    %456 = vmatmul.mubr.f32.gmra.mrb[0].mxu0 %v229
    %v457 = vpop.f32.mrb[0].mxu0
    %v458 = vadd.f32 0.0, %v457
    %v459 = vpop.f32.mrb[0].mxu0
    %460 = vmatprep.mubr.f32.mxu0 0.0
    %461 = vmatmul.mubr.f32.gmra.mrb[0].mxu0 %v230
    %v462 = vpop.f32.mrb[0].mxu0
    %v463 = vadd.f32 0.0, %v462
    %v464 = vpop.f32.mrb[0].mxu0
    %465 = vmatprep.mubr.f32.mxu0 0.0
    %466 = vmatmul.mubr.f32.gmra.mrb[0].mxu0 %v231
    %v467 = vpop.f32.mrb[0].mxu0
    %v468 = vadd.f32 0.0, %v467
    %v469 = vpop.f32.mrb[0].mxu0
    %470 = vmatprep.mubr.f32.mxu0 0.0
    %471 = vmatmul.mubr.f32.gmra.mrb[0].mxu0 %v232
    %v472 = vpop.f32.mrb[0].mxu0
    %v473 = vadd.f32 0.0, %v472
    %v474 = vpop.f32.mrb[0].mxu0
    %475 = vmatprep.mubr.f32.mxu0 0.0
    %476 = vmatmul.mubr.f32.gmra.mrb[0].mxu0 %v233
    %v477 = vpop.f32.mrb[0].mxu0
    %v478 = vadd.f32 0.0, %v477
    %v479 = vpop.f32.mrb[0].mxu0
    %480 = vdwg.mxu0
    %v481 = vld [vmem:[%s3] sm:$0xff]
    %v482 = vld [vmem:[%s3 + $0x8] sm:$0xff]
    %v483 = vld [vmem:[%s3 + $0x10] sm:$0xff]
    %v484 = vld [vmem:[%s3 + $0x18] sm:$0xff]
    %vm485 = vcmask 261120
    %v487 = vsel %vm485, %v403, 0
    %v490 = vsel %vm485, %v408, 0
    %v493 = vsel %vm485, %v413, 0
    %v496 = vsel %vm485, %v418, 0
    %v499 = vsel %vm485, %v423, 0
    %v502 = vsel %vm485, %v428, 0
    %v505 = vsel %vm485, %v433, 0
    %v508 = vsel %vm485, %v438, 0
    %v511 = vsel %vm485, %v443, 0
    %v514 = vsel %vm485, %v448, 0
    %v517 = vsel %vm485, %v453, 0
    %v520 = vsel %vm485, %v458, 0
    %v523 = vsel %vm485, %v463, 0
    %v526 = vsel %vm485, %v468, 0
    %v529 = vsel %vm485, %v473, 0
    %v532 = vsel %vm485, %v478, 0
    %534 = vmatprep.subr.mxu0 0.0
    %535 = vmatpush1.msra.mxu0 %v481
    %536 = vmatprep.subr.mxu0 0.0
    %537 = vmatpush1.msra.mxu0 %v482
    %538 = vmatprep.subr.mxu0 0.0
    %539 = vmatpush1.msra.mxu0 %v483
    %540 = vmatprep.subr.mxu0 0.0
    %541 = vmatpush1.msra.mxu0 %v484
    %542 = vmatprep.subr.mxu0 0.0
    %543 = vmatpush1.msra.mxu0 0.0
    %544 = vmatprep.subr.mxu0 0.0
    %545 = vmatpush1.msra.mxu0 0.0
    %546 = vmatprep.subr.mxu0 0.0
    %547 = vmatpush1.msra.mxu0 0.0
    %548 = vmatprep.subr.mxu0 0.0
    %549 = vmatpush1.msra.mxu0 0.0
    %550 = vmatprep.subr.mxu0 0.0
    %551 = vmatpush1.msra.mxu0 0.0
    %552 = vmatprep.subr.mxu0 0.0
    %553 = vmatpush1.msra.mxu0 0.0
    %554 = vmatprep.subr.mxu0 0.0
    %555 = vmatpush1.msra.mxu0 0.0
    %556 = vmatprep.subr.mxu0 0.0
    %557 = vmatpush1.msra.mxu0 0.0
    %558 = vmatprep.subr.mxu0 0.0
    %559 = vmatpush1.msra.mxu0 0.0
    %560 = vmatprep.subr.mxu0 0.0
    %561 = vmatpush1.msra.mxu0 0.0
    %562 = vmatprep.subr.mxu0 0.0
    %563 = vmatpush1.msra.mxu0 0.0
    %564 = vmatprep.subr.mxu0 0.0
    %565 = vmatpush1.msra.mxu0 0.0
    %566 = vmatprep.subr.mxu0 0.0
    %567 = vmatpush1.msra.mxu0 0.0
    %568 = vmatprep.subr.mxu0 0.0
    %569 = vmatpush1.msra.mxu0 0.0
    %570 = vmatprep.subr.mxu0 0.0
    %571 = vmatpush1.msra.mxu0 0.0
    %572 = vmatprep.subr.mxu0 0.0
    %573 = vmatpush1.msra.mxu0 0.0
    %574 = vmatprep.subr.mxu0 0.0
    %575 = vmatpush1.msra.mxu0 0.0
    %576 = vmatprep.subr.mxu0 0.0
    %577 = vmatpush1.msra.mxu0 0.0
    %578 = vmatprep.subr.mxu0 0.0
    %579 = vmatpush1.msra.mxu0 0.0
    %580 = vmatprep.subr.mxu0 0.0
    %581 = vmatpush1.msra.mxu0 0.0
    %582 = vmatprep.subr.mxu0 0.0
    %583 = vmatpush1.msra.mxu0 0.0
    %584 = vmatprep.subr.mxu0 0.0
    %585 = vmatpush1.msra.mxu0 0.0
    %586 = vmatprep.subr.mxu0 0.0
    %587 = vmatpush1.msra.mxu0 0.0
    %588 = vmatprep.subr.mxu0 0.0
    %589 = vmatpush1.msra.mxu0 0.0
    %590 = vmatprep.subr.mxu0 0.0
    %591 = vmatpush1.msra.mxu0 0.0
    %592 = vmatprep.subr.mxu0 0.0
    %593 = vmatpush1.msra.mxu0 0.0
    %594 = vmatprep.subr.mxu0 0.0
    %595 = vmatpush1.msra.mxu0 0.0
    %596 = vmatprep.subr.mxu0 0.0
    %597 = vmatpush1.msra.mxu0 0.0
    %598 = vmatprep.mubr.f32.mxu0 0.0
    %599 = vmatmul.mubr.f32.gmra.mrb[0].mxu0 %v487
    %v600 = vpop.f32.mrb[0].mxu0
    %v601 = vadd.f32 0.0, %v600
    %v602 = vpop.f32.mrb[0].mxu0
    %603 = vmatprep.mubr.f32.mxu0 0.0
    %604 = vmatmul.mubr.f32.gmra.mrb[0].mxu0 %v490
    %v605 = vpop.f32.mrb[0].mxu0
    %v606 = vadd.f32 0.0, %v605
    %v607 = vpop.f32.mrb[0].mxu0
    %608 = vmatprep.mubr.f32.mxu0 0.0
    %609 = vmatmul.mubr.f32.gmra.mrb[0].mxu0 %v493
    %v610 = vpop.f32.mrb[0].mxu0
    %v611 = vadd.f32 0.0, %v610
    %v612 = vpop.f32.mrb[0].mxu0
    %613 = vmatprep.mubr.f32.mxu0 0.0
    %614 = vmatmul.mubr.f32.gmra.mrb[0].mxu0 %v496
    %v615 = vpop.f32.mrb[0].mxu0
    %v616 = vadd.f32 0.0, %v615
    %v617 = vpop.f32.mrb[0].mxu0
    %618 = vmatprep.mubr.f32.mxu0 0.0
    %619 = vmatmul.mubr.f32.gmra.mrb[0].mxu0 %v499
    %v620 = vpop.f32.mrb[0].mxu0
    %v621 = vadd.f32 0.0, %v620
    %v622 = vpop.f32.mrb[0].mxu0
    %623 = vmatprep.mubr.f32.mxu0 0.0
    %624 = vmatmul.mubr.f32.gmra.mrb[0].mxu0 %v502
    %v625 = vpop.f32.mrb[0].mxu0
    %v626 = vadd.f32 0.0, %v625
    %v627 = vpop.f32.mrb[0].mxu0
    %628 = vmatprep.mubr.f32.mxu0 0.0
    %629 = vmatmul.mubr.f32.gmra.mrb[0].mxu0 %v505
    %v630 = vpop.f32.mrb[0].mxu0
    %v631 = vadd.f32 0.0, %v630
    %v632 = vpop.f32.mrb[0].mxu0
    %633 = vmatprep.mubr.f32.mxu0 0.0
    %634 = vmatmul.mubr.f32.gmra.mrb[0].mxu0 %v508
    %v635 = vpop.f32.mrb[0].mxu0
    %v636 = vadd.f32 0.0, %v635
    %v637 = vpop.f32.mrb[0].mxu0
    %638 = vmatprep.mubr.f32.mxu0 0.0
    %639 = vmatmul.mubr.f32.gmra.mrb[0].mxu0 %v511
    %v640 = vpop.f32.mrb[0].mxu0
    %v641 = vadd.f32 0.0, %v640
    %v642 = vpop.f32.mrb[0].mxu0
    %643 = vmatprep.mubr.f32.mxu0 0.0
    %644 = vmatmul.mubr.f32.gmra.mrb[0].mxu0 %v514
    %v645 = vpop.f32.mrb[0].mxu0
    %v646 = vadd.f32 0.0, %v645
    %v647 = vpop.f32.mrb[0].mxu0
    %648 = vmatprep.mubr.f32.mxu0 0.0
    %649 = vmatmul.mubr.f32.gmra.mrb[0].mxu0 %v517
    %v650 = vpop.f32.mrb[0].mxu0
    %v651 = vadd.f32 0.0, %v650
    %v652 = vpop.f32.mrb[0].mxu0
    %653 = vmatprep.mubr.f32.mxu0 0.0
    %654 = vmatmul.mubr.f32.gmra.mrb[0].mxu0 %v520
    %v655 = vpop.f32.mrb[0].mxu0
    %v656 = vadd.f32 0.0, %v655
    %v657 = vpop.f32.mrb[0].mxu0
    %658 = vmatprep.mubr.f32.mxu0 0.0
    %659 = vmatmul.mubr.f32.gmra.mrb[0].mxu0 %v523
    %v660 = vpop.f32.mrb[0].mxu0
    %v661 = vadd.f32 0.0, %v660
    %v662 = vpop.f32.mrb[0].mxu0
    %663 = vmatprep.mubr.f32.mxu0 0.0
    %664 = vmatmul.mubr.f32.gmra.mrb[0].mxu0 %v526
    %v665 = vpop.f32.mrb[0].mxu0
    %v666 = vadd.f32 0.0, %v665
    %v667 = vpop.f32.mrb[0].mxu0
    %668 = vmatprep.mubr.f32.mxu0 0.0
    %669 = vmatmul.mubr.f32.gmra.mrb[0].mxu0 %v529
    %v670 = vpop.f32.mrb[0].mxu0
    %v671 = vadd.f32 0.0, %v670
    %v672 = vpop.f32.mrb[0].mxu0
    %673 = vmatprep.mubr.f32.mxu0 0.0
    %674 = vmatmul.mubr.f32.gmra.mrb[0].mxu0 %v532
    %v675 = vpop.f32.mrb[0].mxu0
    %v676 = vadd.f32 0.0, %v675
    %v677 = vpop.f32.mrb[0].mxu0
    %678 = vdwg.mxu0
    %680 = vset.pattern.permute.xlu0 0
    %681 = vperm.xlu0 %680, %v283
    %v682 = vpop.permute.xlu0 %681
    %685 = vset.pattern.permute.xlu0 0
    %686 = vperm.xlu0 %685, %v285
    %v687 = vpop.permute.xlu0 %686
    %690 = vset.pattern.permute.xlu0 0
    %691 = vperm.xlu0 %690, %v287
    %v692 = vpop.permute.xlu0 %691
    %695 = vset.pattern.permute.xlu0 0
    %696 = vperm.xlu0 %695, %v289
    %v697 = vpop.permute.xlu0 %696
    %700 = vset.pattern.permute.xlu0 0
    %701 = vperm.xlu0 %700, %v291
    %v702 = vpop.permute.xlu0 %701
    %705 = vset.pattern.permute.xlu0 0
    %706 = vperm.xlu0 %705, %v293
    %v707 = vpop.permute.xlu0 %706
    %710 = vset.pattern.permute.xlu0 0
    %711 = vperm.xlu0 %710, %v295
    %v712 = vpop.permute.xlu0 %711
    %715 = vset.pattern.permute.xlu0 0
    %716 = vperm.xlu0 %715, %v297
    %v717 = vpop.permute.xlu0 %716
    %720 = vset.pattern.permute.xlu0 0
    %721 = vperm.xlu0 %720, %v299
    %v722 = vpop.permute.xlu0 %721
    %725 = vset.pattern.permute.xlu0 0
    %726 = vperm.xlu0 %725, %v301
    %v727 = vpop.permute.xlu0 %726
    %730 = vset.pattern.permute.xlu0 0
    %731 = vperm.xlu0 %730, %v303
    %v732 = vpop.permute.xlu0 %731
    %735 = vset.pattern.permute.xlu0 0
    %736 = vperm.xlu0 %735, %v305
    %v737 = vpop.permute.xlu0 %736
    %740 = vset.pattern.permute.xlu0 0
    %741 = vperm.xlu0 %740, %v307
    %v742 = vpop.permute.xlu0 %741
    %745 = vset.pattern.permute.xlu0 0
    %746 = vperm.xlu0 %745, %v309
    %v747 = vpop.permute.xlu0 %746
    %750 = vset.pattern.permute.xlu0 0
    %751 = vperm.xlu0 %750, %v311
    %v752 = vpop.permute.xlu0 %751
    %755 = vset.pattern.permute.xlu0 0
    %756 = vperm.xlu0 %755, %v313
    %v757 = vpop.permute.xlu0 %756
    %v759 = vmul.f32 %v601, %v682
    %v760 = vmul.f32 %v606, %v687
    %v761 = vmul.f32 %v611, %v692
    %v762 = vmul.f32 %v616, %v697
    %v763 = vmul.f32 %v621, %v702
    %v764 = vmul.f32 %v626, %v707
    %v765 = vmul.f32 %v631, %v712
    %v766 = vmul.f32 %v636, %v717
    %v767 = vmul.f32 %v641, %v722
    %v768 = vmul.f32 %v646, %v727
    %v769 = vmul.f32 %v651, %v732
    %v770 = vmul.f32 %v656, %v737
    %v771 = vmul.f32 %v661, %v742
    %v772 = vmul.f32 %v666, %v747
    %v773 = vmul.f32 %v671, %v752
    %v774 = vmul.f32 %v676, %v757
    %v775 = vld [vmem:[%s4] sm:$0xff]
    %v776 = vld [vmem:[%s4 + $0x8] sm:$0xff]
    %v777 = vld [vmem:[%s4 + $0x10] sm:$0xff]
    %v778 = vld [vmem:[%s4 + $0x18] sm:$0xff]
    %v779 = vld [vmem:[%s5] sm:$0x1]
    %v781 = vlaneseq
    %v782 = vshrl.u32 %v781, 7
    %v783 = vsub.s32 0, %v782
    %v784 = vrot.slane %v779, %v783
    %v787 = vsel %vm485, %v759, 0
    %v790 = vsel %vm485, %v760, 0
    %v793 = vsel %vm485, %v761, 0
    %v796 = vsel %vm485, %v762, 0
    %v799 = vsel %vm485, %v763, 0
    %v802 = vsel %vm485, %v764, 0
    %v805 = vsel %vm485, %v765, 0
    %v808 = vsel %vm485, %v766, 0
    %v811 = vsel %vm485, %v767, 0
    %v814 = vsel %vm485, %v768, 0
    %v817 = vsel %vm485, %v769, 0
    %v820 = vsel %vm485, %v770, 0
    %v823 = vsel %vm485, %v771, 0
    %v826 = vsel %vm485, %v772, 0
    %v829 = vsel %vm485, %v773, 0
    %v832 = vsel %vm485, %v774, 0
    %834 = vmatprep.subr.mxu0 0.0
    %835 = vmatpush1.msra.mxu0 %v775
    %836 = vmatprep.subr.mxu0 0.0
    %837 = vmatpush1.msra.mxu0 %v776
    %838 = vmatprep.subr.mxu0 0.0
    %839 = vmatpush1.msra.mxu0 %v777
    %840 = vmatprep.subr.mxu0 0.0
    %841 = vmatpush1.msra.mxu0 %v778
    %842 = vmatprep.subr.mxu0 0.0
    %843 = vmatpush1.msra.mxu0 0.0
    %844 = vmatprep.subr.mxu0 0.0
    %845 = vmatpush1.msra.mxu0 0.0
    %846 = vmatprep.subr.mxu0 0.0
    %847 = vmatpush1.msra.mxu0 0.0
    %848 = vmatprep.subr.mxu0 0.0
    %849 = vmatpush1.msra.mxu0 0.0
    %850 = vmatprep.subr.mxu0 0.0
    %851 = vmatpush1.msra.mxu0 0.0
    %852 = vmatprep.subr.mxu0 0.0
    %853 = vmatpush1.msra.mxu0 0.0
    %854 = vmatprep.subr.mxu0 0.0
    %855 = vmatpush1.msra.mxu0 0.0
    %856 = vmatprep.subr.mxu0 0.0
    %857 = vmatpush1.msra.mxu0 0.0
    %858 = vmatprep.subr.mxu0 0.0
    %859 = vmatpush1.msra.mxu0 0.0
    %860 = vmatprep.subr.mxu0 0.0
    %861 = vmatpush1.msra.mxu0 0.0
    %862 = vmatprep.subr.mxu0 0.0
    %863 = vmatpush1.msra.mxu0 0.0
    %864 = vmatprep.subr.mxu0 0.0
    %865 = vmatpush1.msra.mxu0 0.0
    %866 = vmatprep.subr.mxu0 0.0
    %867 = vmatpush1.msra.mxu0 0.0
    %868 = vmatprep.subr.mxu0 0.0
    %869 = vmatpush1.msra.mxu0 0.0
    %870 = vmatprep.subr.mxu0 0.0
    %871 = vmatpush1.msra.mxu0 0.0
    %872 = vmatprep.subr.mxu0 0.0
    %873 = vmatpush1.msra.mxu0 0.0
    %874 = vmatprep.subr.mxu0 0.0
    %875 = vmatpush1.msra.mxu0 0.0
    %876 = vmatprep.subr.mxu0 0.0
    %877 = vmatpush1.msra.mxu0 0.0
    %878 = vmatprep.subr.mxu0 0.0
    %879 = vmatpush1.msra.mxu0 0.0
    %880 = vmatprep.subr.mxu0 0.0
    %881 = vmatpush1.msra.mxu0 0.0
    %882 = vmatprep.subr.mxu0 0.0
    %883 = vmatpush1.msra.mxu0 0.0
    %884 = vmatprep.subr.mxu0 0.0
    %885 = vmatpush1.msra.mxu0 0.0
    %886 = vmatprep.subr.mxu0 0.0
    %887 = vmatpush1.msra.mxu0 0.0
    %888 = vmatprep.subr.mxu0 0.0
    %889 = vmatpush1.msra.mxu0 0.0
    %890 = vmatprep.subr.mxu0 0.0
    %891 = vmatpush1.msra.mxu0 0.0
    %892 = vmatprep.subr.mxu0 0.0
    %893 = vmatpush1.msra.mxu0 0.0
    %894 = vmatprep.subr.mxu0 0.0
    %895 = vmatpush1.msra.mxu0 0.0
    %896 = vmatprep.subr.mxu0 0.0
    %897 = vmatpush1.msra.mxu0 0.0
    %898 = vmatprep.mubr.f32.mxu0 0.0
    %899 = vmatmul.mubr.f32.gmra.mrb[0].mxu0 %v787
    %v900 = vpop.f32.mrb[0].mxu0
    %v901 = vadd.f32 %v784, %v900
    %v902 = vpop.f32.mrb[0].mxu0
    %903 = vmatprep.mubr.f32.mxu0 0.0
    %904 = vmatmul.mubr.f32.gmra.mrb[0].mxu0 %v790
    %v905 = vpop.f32.mrb[0].mxu0
    %v906 = vadd.f32 %v784, %v905
    %v907 = vpop.f32.mrb[0].mxu0
    %908 = vmatprep.mubr.f32.mxu0 0.0
    %909 = vmatmul.mubr.f32.gmra.mrb[0].mxu0 %v793
    %v910 = vpop.f32.mrb[0].mxu0
    %v911 = vadd.f32 %v784, %v910
    %v912 = vpop.f32.mrb[0].mxu0
    %913 = vmatprep.mubr.f32.mxu0 0.0
    %914 = vmatmul.mubr.f32.gmra.mrb[0].mxu0 %v796
    %v915 = vpop.f32.mrb[0].mxu0
    %v916 = vadd.f32 %v784, %v915
    %v917 = vpop.f32.mrb[0].mxu0
    %918 = vmatprep.mubr.f32.mxu0 0.0
    %919 = vmatmul.mubr.f32.gmra.mrb[0].mxu0 %v799
    %v920 = vpop.f32.mrb[0].mxu0
    %v921 = vadd.f32 %v784, %v920
    %v922 = vpop.f32.mrb[0].mxu0
    %923 = vmatprep.mubr.f32.mxu0 0.0
    %924 = vmatmul.mubr.f32.gmra.mrb[0].mxu0 %v802
    %v925 = vpop.f32.mrb[0].mxu0
    %v926 = vadd.f32 %v784, %v925
    %v927 = vpop.f32.mrb[0].mxu0
    %928 = vmatprep.mubr.f32.mxu0 0.0
    %929 = vmatmul.mubr.f32.gmra.mrb[0].mxu0 %v805
    %v930 = vpop.f32.mrb[0].mxu0
    %v931 = vadd.f32 %v784, %v930
    %v932 = vpop.f32.mrb[0].mxu0
    %933 = vmatprep.mubr.f32.mxu0 0.0
    %934 = vmatmul.mubr.f32.gmra.mrb[0].mxu0 %v808
    %v935 = vpop.f32.mrb[0].mxu0
    %v936 = vadd.f32 %v784, %v935
    %v937 = vpop.f32.mrb[0].mxu0
    %938 = vmatprep.mubr.f32.mxu0 0.0
    %939 = vmatmul.mubr.f32.gmra.mrb[0].mxu0 %v811
    %v940 = vpop.f32.mrb[0].mxu0
    %v941 = vadd.f32 %v784, %v940
    %v942 = vpop.f32.mrb[0].mxu0
    %943 = vmatprep.mubr.f32.mxu0 0.0
    %944 = vmatmul.mubr.f32.gmra.mrb[0].mxu0 %v814
    %v945 = vpop.f32.mrb[0].mxu0
    %v946 = vadd.f32 %v784, %v945
    %v947 = vpop.f32.mrb[0].mxu0
    %948 = vmatprep.mubr.f32.mxu0 0.0
    %949 = vmatmul.mubr.f32.gmra.mrb[0].mxu0 %v817
    %v950 = vpop.f32.mrb[0].mxu0
    %v951 = vadd.f32 %v784, %v950
    %v952 = vpop.f32.mrb[0].mxu0
    %953 = vmatprep.mubr.f32.mxu0 0.0
    %954 = vmatmul.mubr.f32.gmra.mrb[0].mxu0 %v820
    %v955 = vpop.f32.mrb[0].mxu0
    %v956 = vadd.f32 %v784, %v955
    %v957 = vpop.f32.mrb[0].mxu0
    %958 = vmatprep.mubr.f32.mxu0 0.0
    %959 = vmatmul.mubr.f32.gmra.mrb[0].mxu0 %v823
    %v960 = vpop.f32.mrb[0].mxu0
    %v961 = vadd.f32 %v784, %v960
    %v962 = vpop.f32.mrb[0].mxu0
    %963 = vmatprep.mubr.f32.mxu0 0.0
    %964 = vmatmul.mubr.f32.gmra.mrb[0].mxu0 %v826
    %v965 = vpop.f32.mrb[0].mxu0
    %v966 = vadd.f32 %v784, %v965
    %v967 = vpop.f32.mrb[0].mxu0
    %968 = vmatprep.mubr.f32.mxu0 0.0
    %969 = vmatmul.mubr.f32.gmra.mrb[0].mxu0 %v829
    %v970 = vpop.f32.mrb[0].mxu0
    %v971 = vadd.f32 %v784, %v970
    %v972 = vpop.f32.mrb[0].mxu0
    %973 = vmatprep.mubr.f32.mxu0 0.0
    %974 = vmatmul.mubr.f32.gmra.mrb[0].mxu0 %v832
    %v975 = vpop.f32.mrb[0].mxu0
    %v976 = vadd.f32 %v784, %v975
    %v977 = vpop.f32.mrb[0].mxu0
    %978 = vdwg.mxu0
    %979 = vst [vmem:[#allocation2] sm:$0xff] %v901
    %980 = vst [vmem:[#allocation2 + $0x8] sm:$0xff] %v906
    %981 = vst [vmem:[#allocation2 + $0x10] sm:$0xff] %v911
    %982 = vst [vmem:[#allocation2 + $0x18] sm:$0xff] %v916
    %983 = vst [vmem:[#allocation2 + $0x20] sm:$0xff] %v921
    %984 = vst [vmem:[#allocation2 + $0x28] sm:$0xff] %v926
    %985 = vst [vmem:[#allocation2 + $0x30] sm:$0xff] %v931
    %986 = vst [vmem:[#allocation2 + $0x38] sm:$0xff] %v936
    %987 = vst [vmem:[#allocation2 + $0x40] sm:$0xff] %v941
    %988 = vst [vmem:[#allocation2 + $0x48] sm:$0xff] %v946
    %989 = vst [vmem:[#allocation2 + $0x50] sm:$0xff] %v951
    %990 = vst [vmem:[#allocation2 + $0x58] sm:$0xff] %v956
    %991 = vst [vmem:[#allocation2 + $0x60] sm:$0xff] %v961
    %992 = vst [vmem:[#allocation2 + $0x68] sm:$0xff] %v966
    %993 = vst [vmem:[#allocation2 + $0x70] sm:$0xff] %v971
    %994 = vst [vmem:[#allocation2 + $0x78] sm:$0xff] %v976
    // Predicated region
    $region26: #{tpu_custom_call.1} parent=1 // pred_check
      _
    $region27: #{tpu_custom_call.1} parent=1 // pred_check_branch
      %996 = sbr.rel (0) target = $region29
    $region28: #{tpu_custom_call.1} parent=1 // pred_region
      %s998 = ssub.s32 2048, 2048
      %999 = vsyncadd [#allocation3], %s998
      %s1000 = sshll.u32 [#allocation2], 4
      %s1001 = int_to_ptr.vmem [resolvable:$true] %s1000
      %1006 = dma.vmem_to_hbm [thread:$0]  %s1001, 2048, %s6, [#allocation3], 128, 128, 8
    $region29: #{tpu_custom_call.1} parent=1 // pred_fallthru
      _
    // Predicated region
    $region30: #{tpu_custom_call.1} parent=1 // pred_check
      _
    $region31: #{tpu_custom_call.1} parent=1 // pred_check_branch
      %1008 = sbr.rel (0) target = $region33
    $region32: #{tpu_custom_call.1} parent=1 // pred_region
      %1009 = dma.done [#allocation3], 2048
    $region33: #{tpu_custom_call.1} parent=1 // pred_fallthru
      _
    %1010 = vsyncpa [#allocation3], 1

// kernel: tpu_custom_call.1
$region0: #{tpu_custom_call.1}
  #allocation0 [shape = 'u32[]', space=smem, size = 0x4, offset = 0x4, fixed_abs, tag = 'smem constant byte address 0x4 - core index']
  #allocation1 [shape = 'u32[144,128]{1,0:T(1,128)}', space=vmem, size = 0x12000, scoped, tag = 'internal scratch']
  %s0 = inlined_call_operand.vmem [shape: s32[1,128], index: 0, kind: input, shape index: {}]
  %s1 = inlined_call_operand.vmem [shape: s32[128,1], index: 1, kind: input, shape index: {}]
  %s2 = inlined_call_operand.vmem [shape: s32[128,1], index: 2, kind: input, shape index: {}]
  %s3 = inlined_call_operand.vmem [shape: f32[32,32], index: 3, kind: input, shape index: {}]
  %s4 = inlined_call_operand.vmem [shape: f32[32,128], index: 4, kind: input, shape index: {}]
  %s5 = inlined_call_operand.vmem [shape: f32[1,128], index: 5, kind: input, shape index: {}]
  %s6 = inlined_call_operand.hbm [shape: f32[128,128], index: 6, kind: output, shape index: {}]
  %s7 = sld [smem:[#allocation0]]
  $region34: #{tpu_custom_call.1} parent=0
    _
  %s9 = ssub.s32 1, %s7
  %s10 = scalar_select 0, %s9, %s7
  $region1: #{tpu_custom_call.1} parent=0
    #allocation2 [shape = 'u8[65536]{0}', space=vmem, size = 0x10000, scoped, tag = 'output window, operand 0, single buffered']
    #allocation3 [shape = 's32[1]{0}', space=sflag, size = 0x4, scoped, tag = 'scoped memory for tpu_custom_call.1']
    %11 = vsyncpa [#allocation3], 0
    // Predicated region
    $region2: #{tpu_custom_call.1} parent=1 // pred_check
      _
    $region3: #{tpu_custom_call.1} parent=1 // pred_check_branch
      %13 = sbr.rel (0) target = $region5
    $region4: #{tpu_custom_call.1} parent=1 // pred_region
      _
    $region5: #{tpu_custom_call.1} parent=1 // pred_fallthru
      _
    // Predicated region
    $region6: #{tpu_custom_call.1} parent=1 // pred_check
      _
    $region7: #{tpu_custom_call.1} parent=1 // pred_check_branch
      %15 = sbr.rel (0) target = $region9
    $region8: #{tpu_custom_call.1} parent=1 // pred_region
      _
    $region9: #{tpu_custom_call.1} parent=1 // pred_fallthru
      _
    // Predicated region
    $region10: #{tpu_custom_call.1} parent=1 // pred_check
      _
    $region11: #{tpu_custom_call.1} parent=1 // pred_check_branch
      %17 = sbr.rel (0) target = $region13
    $region12: #{tpu_custom_call.1} parent=1 // pred_region
      _
    $region13: #{tpu_custom_call.1} parent=1 // pred_fallthru
      _
    // Predicated region
    $region14: #{tpu_custom_call.1} parent=1 // pred_check
      _
    $region15: #{tpu_custom_call.1} parent=1 // pred_check_branch
      %19 = sbr.rel (0) target = $region17
    $region16: #{tpu_custom_call.1} parent=1 // pred_region
      _
    $region17: #{tpu_custom_call.1} parent=1 // pred_fallthru
      _
    // Predicated region
    $region18: #{tpu_custom_call.1} parent=1 // pred_check
      _
    $region19: #{tpu_custom_call.1} parent=1 // pred_check_branch
      %21 = sbr.rel (0) target = $region21
    $region20: #{tpu_custom_call.1} parent=1 // pred_region
      _
    $region21: #{tpu_custom_call.1} parent=1 // pred_fallthru
      _
    // Predicated region
    $region22: #{tpu_custom_call.1} parent=1 // pred_check
      _
    $region23: #{tpu_custom_call.1} parent=1 // pred_check_branch
      %23 = sbr.rel (0) target = $region25
    $region24: #{tpu_custom_call.1} parent=1 // pred_region
      _
    $region25: #{tpu_custom_call.1} parent=1 // pred_fallthru
      _
    %v24 = vlaneseq
    %v25 = vand.u32 %v24, 127
    %v26 = vld [vmem:[%s1] sm:$0xff]
    %v27 = vld [vmem:[%s1 + $0x8] sm:$0xff]
    %v28 = vld [vmem:[%s1 + $0x10] sm:$0xff]
    %v29 = vld [vmem:[%s1 + $0x18] sm:$0xff]
    %v30 = vld [vmem:[%s1 + $0x20] sm:$0xff]
    %v31 = vld [vmem:[%s1 + $0x28] sm:$0xff]
    %v32 = vld [vmem:[%s1 + $0x30] sm:$0xff]
    %v33 = vld [vmem:[%s1 + $0x38] sm:$0xff]
    %v34 = vld [vmem:[%s1 + $0x40] sm:$0xff]
    %v35 = vld [vmem:[%s1 + $0x48] sm:$0xff]
    %v36 = vld [vmem:[%s1 + $0x50] sm:$0xff]
    %v37 = vld [vmem:[%s1 + $0x58] sm:$0xff]
    %v38 = vld [vmem:[%s1 + $0x60] sm:$0xff]
    %v39 = vld [vmem:[%s1 + $0x68] sm:$0xff]
    %v40 = vld [vmem:[%s1 + $0x70] sm:$0xff]
    %v41 = vld [vmem:[%s1 + $0x78] sm:$0xff]
    %v42 = vld [vmem:[%s2] sm:$0xff]
    %v43 = vld [vmem:[%s2 + $0x8] sm:$0xff]
    %v44 = vld [vmem:[%s2 + $0x10] sm:$0xff]
    %v45 = vld [vmem:[%s2 + $0x18] sm:$0xff]
    %v46 = vld [vmem:[%s2 + $0x20] sm:$0xff]
    %v47 = vld [vmem:[%s2 + $0x28] sm:$0xff]
    %v48 = vld [vmem:[%s2 + $0x30] sm:$0xff]
    %v49 = vld [vmem:[%s2 + $0x38] sm:$0xff]
    %v50 = vld [vmem:[%s2 + $0x40] sm:$0xff]
    %v51 = vld [vmem:[%s2 + $0x48] sm:$0xff]
    %v52 = vld [vmem:[%s2 + $0x50] sm:$0xff]
    %v53 = vld [vmem:[%s2 + $0x58] sm:$0xff]
    %v54 = vld [vmem:[%s2 + $0x60] sm:$0xff]
    %v55 = vld [vmem:[%s2 + $0x68] sm:$0xff]
    %v56 = vld [vmem:[%s2 + $0x70] sm:$0xff]
    %v57 = vld [vmem:[%s2 + $0x78] sm:$0xff]
    %58 = vset.pattern.permute.xlu0 0
    %59 = vperm.xlu0 %58, %v26
    %v60 = vpop.permute.xlu0 %59
    %61 = vset.pattern.permute.xlu0 0
    %62 = vperm.xlu0 %61, %v27
    %v63 = vpop.permute.xlu0 %62
    %64 = vset.pattern.permute.xlu0 0
    %65 = vperm.xlu0 %64, %v28
    %v66 = vpop.permute.xlu0 %65
    %67 = vset.pattern.permute.xlu0 0
    %68 = vperm.xlu0 %67, %v29
    %v69 = vpop.permute.xlu0 %68
    %70 = vset.pattern.permute.xlu0 0
    %71 = vperm.xlu0 %70, %v30
    %v72 = vpop.permute.xlu0 %71
    %73 = vset.pattern.permute.xlu0 0
    %74 = vperm.xlu0 %73, %v31
    %v75 = vpop.permute.xlu0 %74
    %76 = vset.pattern.permute.xlu0 0
    %77 = vperm.xlu0 %76, %v32
    %v78 = vpop.permute.xlu0 %77
    %79 = vset.pattern.permute.xlu0 0
    %80 = vperm.xlu0 %79, %v33
    %v81 = vpop.permute.xlu0 %80
    %82 = vset.pattern.permute.xlu0 0
    %83 = vperm.xlu0 %82, %v34
    %v84 = vpop.permute.xlu0 %83
    %85 = vset.pattern.permute.xlu0 0
    %86 = vperm.xlu0 %85, %v35
    %v87 = vpop.permute.xlu0 %86
    %88 = vset.pattern.permute.xlu0 0
    %89 = vperm.xlu0 %88, %v36
    %v90 = vpop.permute.xlu0 %89
    %91 = vset.pattern.permute.xlu0 0
    %92 = vperm.xlu0 %91, %v37
    %v93 = vpop.permute.xlu0 %92
    %94 = vset.pattern.permute.xlu0 0
    %95 = vperm.xlu0 %94, %v38
    %v96 = vpop.permute.xlu0 %95
    %97 = vset.pattern.permute.xlu0 0
    %98 = vperm.xlu0 %97, %v39
    %v99 = vpop.permute.xlu0 %98
    %100 = vset.pattern.permute.xlu0 0
    %101 = vperm.xlu0 %100, %v40
    %v102 = vpop.permute.xlu0 %101
    %103 = vset.pattern.permute.xlu0 0
    %104 = vperm.xlu0 %103, %v41
    %v105 = vpop.permute.xlu0 %104
    %vm106 = vcmp.ge.s32.totalorder %v25, %v60
    %vm107 = vcmp.ge.s32.totalorder %v25, %v63
    %vm108 = vcmp.ge.s32.totalorder %v25, %v66
    %vm109 = vcmp.ge.s32.totalorder %v25, %v69
    %vm110 = vcmp.ge.s32.totalorder %v25, %v72
    %vm111 = vcmp.ge.s32.totalorder %v25, %v75
    %vm112 = vcmp.ge.s32.totalorder %v25, %v78
    %vm113 = vcmp.ge.s32.totalorder %v25, %v81
    %vm114 = vcmp.ge.s32.totalorder %v25, %v84
    %vm115 = vcmp.ge.s32.totalorder %v25, %v87
    %vm116 = vcmp.ge.s32.totalorder %v25, %v90
    %vm117 = vcmp.ge.s32.totalorder %v25, %v93
    %vm118 = vcmp.ge.s32.totalorder %v25, %v96
    %vm119 = vcmp.ge.s32.totalorder %v25, %v99
    %vm120 = vcmp.ge.s32.totalorder %v25, %v102
    %vm121 = vcmp.ge.s32.totalorder %v25, %v105
    %122 = vset.pattern.permute.xlu0 0
    %123 = vperm.xlu0 %122, %v42
    %v124 = vpop.permute.xlu0 %123
    %125 = vset.pattern.permute.xlu0 0
    %126 = vperm.xlu0 %125, %v43
    %v127 = vpop.permute.xlu0 %126
    %128 = vset.pattern.permute.xlu0 0
    %129 = vperm.xlu0 %128, %v44
    %v130 = vpop.permute.xlu0 %129
    %131 = vset.pattern.permute.xlu0 0
    %132 = vperm.xlu0 %131, %v45
    %v133 = vpop.permute.xlu0 %132
    %134 = vset.pattern.permute.xlu0 0
    %135 = vperm.xlu0 %134, %v46
    %v136 = vpop.permute.xlu0 %135
    %137 = vset.pattern.permute.xlu0 0
    %138 = vperm.xlu0 %137, %v47
    %v139 = vpop.permute.xlu0 %138
    %140 = vset.pattern.permute.xlu0 0
    %141 = vperm.xlu0 %140, %v48
    %v142 = vpop.permute.xlu0 %141
    %143 = vset.pattern.permute.xlu0 0
    %144 = vperm.xlu0 %143, %v49
    %v145 = vpop.permute.xlu0 %144
    %146 = vset.pattern.permute.xlu0 0
    %147 = vperm.xlu0 %146, %v50
    %v148 = vpop.permute.xlu0 %147
    %149 = vset.pattern.permute.xlu0 0
    %150 = vperm.xlu0 %149, %v51
    %v151 = vpop.permute.xlu0 %150
    %152 = vset.pattern.permute.xlu0 0
    %153 = vperm.xlu0 %152, %v52
    %v154 = vpop.permute.xlu0 %153
    %155 = vset.pattern.permute.xlu0 0
    %156 = vperm.xlu0 %155, %v53
    %v157 = vpop.permute.xlu0 %156
    %158 = vset.pattern.permute.xlu0 0
    %159 = vperm.xlu0 %158, %v54
    %v160 = vpop.permute.xlu0 %159
    %161 = vset.pattern.permute.xlu0 0
    %162 = vperm.xlu0 %161, %v55
    %v163 = vpop.permute.xlu0 %162
    %164 = vset.pattern.permute.xlu0 0
    %165 = vperm.xlu0 %164, %v56
    %v166 = vpop.permute.xlu0 %165
    %167 = vset.pattern.permute.xlu0 0
    %168 = vperm.xlu0 %167, %v57
    %v169 = vpop.permute.xlu0 %168
    %vm170 = vcmp.lt.s32.totalorder %v25, %v124
    %vm171 = vcmp.lt.s32.totalorder %v25, %v127
    %vm172 = vcmp.lt.s32.totalorder %v25, %v130
    %vm173 = vcmp.lt.s32.totalorder %v25, %v133
    %vm174 = vcmp.lt.s32.totalorder %v25, %v136
    %vm175 = vcmp.lt.s32.totalorder %v25, %v139
    %vm176 = vcmp.lt.s32.totalorder %v25, %v142
    %vm177 = vcmp.lt.s32.totalorder %v25, %v145
    %vm178 = vcmp.lt.s32.totalorder %v25, %v148
    %vm179 = vcmp.lt.s32.totalorder %v25, %v151
    %vm180 = vcmp.lt.s32.totalorder %v25, %v154
    %vm181 = vcmp.lt.s32.totalorder %v25, %v157
    %vm182 = vcmp.lt.s32.totalorder %v25, %v160
    %vm183 = vcmp.lt.s32.totalorder %v25, %v163
    %vm184 = vcmp.lt.s32.totalorder %v25, %v166
    %vm185 = vcmp.lt.s32.totalorder %v25, %v169
    %vm186 = vmand %vm106, %vm170
    %vm187 = vmand %vm107, %vm171
    %vm188 = vmand %vm108, %vm172
    %vm189 = vmand %vm109, %vm173
    %vm190 = vmand %vm110, %vm174
    %vm191 = vmand %vm111, %vm175
    %vm192 = vmand %vm112, %vm176
    %vm193 = vmand %vm113, %vm177
    %vm194 = vmand %vm114, %vm178
    %vm195 = vmand %vm115, %vm179
    %vm196 = vmand %vm116, %vm180
    %vm197 = vmand %vm117, %vm181
    %vm198 = vmand %vm118, %vm182
    %vm199 = vmand %vm119, %vm183
    %vm200 = vmand %vm120, %vm184
    %vm201 = vmand %vm121, %vm185
    %v202 = vsel %vm186, 1, 0
    %v203 = vsel %vm187, 1, 0
    %v204 = vsel %vm188, 1, 0
    %v205 = vsel %vm189, 1, 0
    %v206 = vsel %vm190, 1, 0
    %v207 = vsel %vm191, 1, 0
    %v208 = vsel %vm192, 1, 0
    %v209 = vsel %vm193, 1, 0
    %v210 = vsel %vm194, 1, 0
    %v211 = vsel %vm195, 1, 0
    %v212 = vsel %vm196, 1, 0
    %v213 = vsel %vm197, 1, 0
    %v214 = vsel %vm198, 1, 0
    %v215 = vsel %vm199, 1, 0
    %v216 = vsel %vm200, 1, 0
    %v217 = vsel %vm201, 1, 0
    %v218 = vcvt.s32.f32 %v202
    %v219 = vcvt.s32.f32 %v203
    %v220 = vcvt.s32.f32 %v204
    %v221 = vcvt.s32.f32 %v205
    %v222 = vcvt.s32.f32 %v206
    %v223 = vcvt.s32.f32 %v207
    %v224 = vcvt.s32.f32 %v208
    %v225 = vcvt.s32.f32 %v209
    %v226 = vcvt.s32.f32 %v210
    %v227 = vcvt.s32.f32 %v211
    %v228 = vcvt.s32.f32 %v212
    %v229 = vcvt.s32.f32 %v213
    %v230 = vcvt.s32.f32 %v214
    %v231 = vcvt.s32.f32 %v215
    %v232 = vcvt.s32.f32 %v216
    %v233 = vcvt.s32.f32 %v217
    %v234 = vsub.s32 %v42, %v26
    %v235 = vsub.s32 %v43, %v27
    %v236 = vsub.s32 %v44, %v28
    %v237 = vsub.s32 %v45, %v29
    %v238 = vsub.s32 %v46, %v30
    %v239 = vsub.s32 %v47, %v31
    %v240 = vsub.s32 %v48, %v32
    %v241 = vsub.s32 %v49, %v33
    %v242 = vsub.s32 %v50, %v34
    %v243 = vsub.s32 %v51, %v35
    %v244 = vsub.s32 %v52, %v36
    %v245 = vsub.s32 %v53, %v37
    %v246 = vsub.s32 %v54, %v38
    %v247 = vsub.s32 %v55, %v39
    %v248 = vsub.s32 %v56, %v40
    %v249 = vsub.s32 %v57, %v41
    %v250 = vcvt.s32.f32 %v234
    %v251 = vcvt.s32.f32 %v235
    %v252 = vcvt.s32.f32 %v236
    %v253 = vcvt.s32.f32 %v237
    %v254 = vcvt.s32.f32 %v238
    %v255 = vcvt.s32.f32 %v239
    %v256 = vcvt.s32.f32 %v240
    %v257 = vcvt.s32.f32 %v241
    %v258 = vcvt.s32.f32 %v242
    %v259 = vcvt.s32.f32 %v243
    %v260 = vcvt.s32.f32 %v244
    %v261 = vcvt.s32.f32 %v245
    %v262 = vcvt.s32.f32 %v246
    %v263 = vcvt.s32.f32 %v247
    %v264 = vcvt.s32.f32 %v248
    %v265 = vcvt.s32.f32 %v249
    %v266 = vmax.f32 %v250, 1.0
    %v267 = vmax.f32 %v251, 1.0
    %v268 = vmax.f32 %v252, 1.0
    %v269 = vmax.f32 %v253, 1.0
    %v270 = vmax.f32 %v254, 1.0
    %v271 = vmax.f32 %v255, 1.0
    %v272 = vmax.f32 %v256, 1.0
    %v273 = vmax.f32 %v257, 1.0
    %v274 = vmax.f32 %v258, 1.0
    %v275 = vmax.f32 %v259, 1.0
    %v276 = vmax.f32 %v260, 1.0
    %v277 = vmax.f32 %v261, 1.0
    %v278 = vmax.f32 %v262, 1.0
    %v279 = vmax.f32 %v263, 1.0
    %v280 = vmax.f32 %v264, 1.0
    %v281 = vmax.f32 %v265, 1.0
    %v282 = vrcp.pop %v266
    %v283 = vmul.f32 1.0, %v282
    %v284 = vrcp.pop %v267
    %v285 = vmul.f32 1.0, %v284
    %v286 = vrcp.pop %v268
    %v287 = vmul.f32 1.0, %v286
    %v288 = vrcp.pop %v269
    %v289 = vmul.f32 1.0, %v288
    %v290 = vrcp.pop %v270
    %v291 = vmul.f32 1.0, %v290
    %v292 = vrcp.pop %v271
    %v293 = vmul.f32 1.0, %v292
    %v294 = vrcp.pop %v272
    %v295 = vmul.f32 1.0, %v294
    %v296 = vrcp.pop %v273
    %v297 = vmul.f32 1.0, %v296
    %v298 = vrcp.pop %v274
    %v299 = vmul.f32 1.0, %v298
    %v300 = vrcp.pop %v275
    %v301 = vmul.f32 1.0, %v300
    %v302 = vrcp.pop %v276
    %v303 = vmul.f32 1.0, %v302
    %v304 = vrcp.pop %v277
    %v305 = vmul.f32 1.0, %v304
    %v306 = vrcp.pop %v278
    %v307 = vmul.f32 1.0, %v306
    %v308 = vrcp.pop %v279
    %v309 = vmul.f32 1.0, %v308
    %v310 = vrcp.pop %v280
    %v311 = vmul.f32 1.0, %v310
    %v312 = vrcp.pop %v281
    %v313 = vmul.f32 1.0, %v312
    %v314 = vlaneseq
    %v315 = vshrl.u32 %v314, 7
    %v316 = vadd.s32 %v315, 8
    %v317 = vadd.s32 %v315, 16
    %v318 = vadd.s32 %v315, 24
    %v319 = vld [vmem:[%s0] sm:$0x1]
    %v320 = vlaneseq
    %v321 = vshrl.u32 %v320, 7
    %v322 = vsub.s32 0, %v321
    %v323 = vrot.slane %v319, %v322
    %vm324 = vcmp.eq.s32.totalorder %v323, %v315
    %vm325 = vcmp.eq.s32.totalorder %v323, %v316
    %vm326 = vcmp.eq.s32.totalorder %v323, %v317
    %vm327 = vcmp.eq.s32.totalorder %v323, %v318
    %v328 = vsel %vm324, 1, 0
    %v329 = vsel %vm325, 1, 0
    %v330 = vsel %vm326, 1, 0
    %v331 = vsel %vm327, 1, 0
    %v332 = vcvt.s32.f32 %v328
    %v333 = vcvt.s32.f32 %v329
    %v334 = vcvt.s32.f32 %v330
    %v335 = vcvt.s32.f32 %v331
    %336 = vmatprep.subr.mxu0 0.0
    %337 = vmatpush1.xpose.msra.mxu0 %v332
    %338 = vmatprep.subr.mxu0 0.0
    %339 = vmatpush1.xpose.msra.mxu0 %v333
    %340 = vmatprep.subr.mxu0 0.0
    %341 = vmatpush1.xpose.msra.mxu0 %v334
    %342 = vmatprep.subr.mxu0 0.0
    %343 = vmatpush1.xpose.msra.mxu0 %v335
    %344 = vmatprep.subr.mxu0 0.0
    %345 = vmatpush1.xpose.msra.mxu0 0.0
    %346 = vmatprep.subr.mxu0 0.0
    %347 = vmatpush1.xpose.msra.mxu0 0.0
    %348 = vmatprep.subr.mxu0 0.0
    %349 = vmatpush1.xpose.msra.mxu0 0.0
    %350 = vmatprep.subr.mxu0 0.0
    %351 = vmatpush1.xpose.msra.mxu0 0.0
    %352 = vmatprep.subr.mxu0 0.0
    %353 = vmatpush1.xpose.msra.mxu0 0.0
    %354 = vmatprep.subr.mxu0 0.0
    %355 = vmatpush1.xpose.msra.mxu0 0.0
    %356 = vmatprep.subr.mxu0 0.0
    %357 = vmatpush1.xpose.msra.mxu0 0.0
    %358 = vmatprep.subr.mxu0 0.0
    %359 = vmatpush1.xpose.msra.mxu0 0.0
    %360 = vmatprep.subr.mxu0 0.0
    %361 = vmatpush1.xpose.msra.mxu0 0.0
    %362 = vmatprep.subr.mxu0 0.0
    %363 = vmatpush1.xpose.msra.mxu0 0.0
    %364 = vmatprep.subr.mxu0 0.0
    %365 = vmatpush1.xpose.msra.mxu0 0.0
    %366 = vmatprep.subr.mxu0 0.0
    %367 = vmatpush1.xpose.msra.mxu0 0.0
    %368 = vmatprep.subr.mxu0 0.0
    %369 = vmatpush1.xpose.msra.mxu0 0.0
    %370 = vmatprep.subr.mxu0 0.0
    %371 = vmatpush1.xpose.msra.mxu0 0.0
    %372 = vmatprep.subr.mxu0 0.0
    %373 = vmatpush1.xpose.msra.mxu0 0.0
    %374 = vmatprep.subr.mxu0 0.0
    %375 = vmatpush1.xpose.msra.mxu0 0.0
    %376 = vmatprep.subr.mxu0 0.0
    %377 = vmatpush1.xpose.msra.mxu0 0.0
    %378 = vmatprep.subr.mxu0 0.0
    %379 = vmatpush1.xpose.msra.mxu0 0.0
    %380 = vmatprep.subr.mxu0 0.0
    %381 = vmatpush1.xpose.msra.mxu0 0.0
    %382 = vmatprep.subr.mxu0 0.0
    %383 = vmatpush1.xpose.msra.mxu0 0.0
    %384 = vmatprep.subr.mxu0 0.0
    %385 = vmatpush1.xpose.msra.mxu0 0.0
    %386 = vmatprep.subr.mxu0 0.0
    %387 = vmatpush1.xpose.msra.mxu0 0.0
    %388 = vmatprep.subr.mxu0 0.0
    %389 = vmatpush1.xpose.msra.mxu0 0.0
    %390 = vmatprep.subr.mxu0 0.0
    %391 = vmatpush1.xpose.msra.mxu0 0.0
    %392 = vmatprep.subr.mxu0 0.0
    %393 = vmatpush1.xpose.msra.mxu0 0.0
    %394 = vmatprep.subr.mxu0 0.0
    %395 = vmatpush1.xpose.msra.mxu0 0.0
    %396 = vmatprep.subr.mxu0 0.0
    %397 = vmatpush1.xpose.msra.mxu0 0.0
    %398 = vmatprep.subr.mxu0 0.0
    %399 = vmatpush1.xpose.msra.mxu0 0.0
    %400 = vmatprep.mubr.f32.mxu0 0.0
    %401 = vmatmul.mubr.f32.gmra.mrb[0].mxu0 %v218
    %v402 = vpop.f32.mrb[0].mxu0
    %v403 = vadd.f32 0.0, %v402
    %v404 = vpop.f32.mrb[0].mxu0
    %405 = vmatprep.mubr.f32.mxu0 0.0
    %406 = vmatmul.mubr.f32.gmra.mrb[0].mxu0 %v219
    %v407 = vpop.f32.mrb[0].mxu0
    %v408 = vadd.f32 0.0, %v407
    %v409 = vpop.f32.mrb[0].mxu0
    %410 = vmatprep.mubr.f32.mxu0 0.0
    %411 = vmatmul.mubr.f32.gmra.mrb[0].mxu0 %v220
    %v412 = vpop.f32.mrb[0].mxu0
    %v413 = vadd.f32 0.0, %v412
    %v414 = vpop.f32.mrb[0].mxu0
    %415 = vmatprep.mubr.f32.mxu0 0.0
    %416 = vmatmul.mubr.f32.gmra.mrb[0].mxu0 %v221
    %v417 = vpop.f32.mrb[0].mxu0
    %v418 = vadd.f32 0.0, %v417
    %v419 = vpop.f32.mrb[0].mxu0
    %420 = vmatprep.mubr.f32.mxu0 0.0
    %421 = vmatmul.mubr.f32.gmra.mrb[0].mxu0 %v222
    %v422 = vpop.f32.mrb[0].mxu0
    %v423 = vadd.f32 0.0, %v422
    %v424 = vpop.f32.mrb[0].mxu0
    %425 = vmatprep.mubr.f32.mxu0 0.0
    %426 = vmatmul.mubr.f32.gmra.mrb[0].mxu0 %v223
    %v427 = vpop.f32.mrb[0].mxu0
    %v428 = vadd.f32 0.0, %v427
    %v429 = vpop.f32.mrb[0].mxu0
    %430 = vmatprep.mubr.f32.mxu0 0.0
    %431 = vmatmul.mubr.f32.gmra.mrb[0].mxu0 %v224
    %v432 = vpop.f32.mrb[0].mxu0
    %v433 = vadd.f32 0.0, %v432
    %v434 = vpop.f32.mrb[0].mxu0
    %435 = vmatprep.mubr.f32.mxu0 0.0
    %436 = vmatmul.mubr.f32.gmra.mrb[0].mxu0 %v225
    %v437 = vpop.f32.mrb[0].mxu0
    %v438 = vadd.f32 0.0, %v437
    %v439 = vpop.f32.mrb[0].mxu0
    %440 = vmatprep.mubr.f32.mxu0 0.0
    %441 = vmatmul.mubr.f32.gmra.mrb[0].mxu0 %v226
    %v442 = vpop.f32.mrb[0].mxu0
    %v443 = vadd.f32 0.0, %v442
    %v444 = vpop.f32.mrb[0].mxu0
    %445 = vmatprep.mubr.f32.mxu0 0.0
    %446 = vmatmul.mubr.f32.gmra.mrb[0].mxu0 %v227
    %v447 = vpop.f32.mrb[0].mxu0
    %v448 = vadd.f32 0.0, %v447
    %v449 = vpop.f32.mrb[0].mxu0
    %450 = vmatprep.mubr.f32.mxu0 0.0
    %451 = vmatmul.mubr.f32.gmra.mrb[0].mxu0 %v228
    %v452 = vpop.f32.mrb[0].mxu0
    %v453 = vadd.f32 0.0, %v452
    %v454 = vpop.f32.mrb[0].mxu0
    %455 = vmatprep.mubr.f32.mxu0 0.0
    %456 = vmatmul.mubr.f32.gmra.mrb[0].mxu0 %v229
    %v457 = vpop.f32.mrb[0].mxu0
    %v458 = vadd.f32 0.0, %v457
    %v459 = vpop.f32.mrb[0].mxu0
    %460 = vmatprep.mubr.f32.mxu0 0.0
    %461 = vmatmul.mubr.f32.gmra.mrb[0].mxu0 %v230
    %v462 = vpop.f32.mrb[0].mxu0
    %v463 = vadd.f32 0.0, %v462
    %v464 = vpop.f32.mrb[0].mxu0
    %465 = vmatprep.mubr.f32.mxu0 0.0
    %466 = vmatmul.mubr.f32.gmra.mrb[0].mxu0 %v231
    %v467 = vpop.f32.mrb[0].mxu0
    %v468 = vadd.f32 0.0, %v467
    %v469 = vpop.f32.mrb[0].mxu0
    %470 = vmatprep.mubr.f32.mxu0 0.0
    %471 = vmatmul.mubr.f32.gmra.mrb[0].mxu0 %v232
    %v472 = vpop.f32.mrb[0].mxu0
    %v473 = vadd.f32 0.0, %v472
    %v474 = vpop.f32.mrb[0].mxu0
    %475 = vmatprep.mubr.f32.mxu0 0.0
    %476 = vmatmul.mubr.f32.gmra.mrb[0].mxu0 %v233
    %v477 = vpop.f32.mrb[0].mxu0
    %v478 = vadd.f32 0.0, %v477
    %v479 = vpop.f32.mrb[0].mxu0
    %480 = vdwg.mxu0
    %v481 = vld [vmem:[%s3] sm:$0xff]
    %v482 = vld [vmem:[%s3 + $0x8] sm:$0xff]
    %v483 = vld [vmem:[%s3 + $0x10] sm:$0xff]
    %v484 = vld [vmem:[%s3 + $0x18] sm:$0xff]
    %vm485 = vcmask 261120
    %v487 = vsel %vm485, %v403, 0
    %v490 = vsel %vm485, %v408, 0
    %v493 = vsel %vm485, %v413, 0
    %v496 = vsel %vm485, %v418, 0
    %v499 = vsel %vm485, %v423, 0
    %v502 = vsel %vm485, %v428, 0
    %v505 = vsel %vm485, %v433, 0
    %v508 = vsel %vm485, %v438, 0
    %v511 = vsel %vm485, %v443, 0
    %v514 = vsel %vm485, %v448, 0
    %v517 = vsel %vm485, %v453, 0
    %v520 = vsel %vm485, %v458, 0
    %v523 = vsel %vm485, %v463, 0
    %v526 = vsel %vm485, %v468, 0
    %v529 = vsel %vm485, %v473, 0
    %v532 = vsel %vm485, %v478, 0
    %534 = vmatprep.subr.mxu0 0.0
    %535 = vmatpush1.msra.mxu0 %v481
    %536 = vmatprep.subr.mxu0 0.0
    %537 = vmatpush1.msra.mxu0 %v482
    %538 = vmatprep.subr.mxu0 0.0
    %539 = vmatpush1.msra.mxu0 %v483
    %540 = vmatprep.subr.mxu0 0.0
    %541 = vmatpush1.msra.mxu0 %v484
    %542 = vmatprep.subr.mxu0 0.0
    %543 = vmatpush1.msra.mxu0 0.0
    %544 = vmatprep.subr.mxu0 0.0
    %545 = vmatpush1.msra.mxu0 0.0
    %546 = vmatprep.subr.mxu0 0.0
    %547 = vmatpush1.msra.mxu0 0.0
    %548 = vmatprep.subr.mxu0 0.0
    %549 = vmatpush1.msra.mxu0 0.0
    %550 = vmatprep.subr.mxu0 0.0
    %551 = vmatpush1.msra.mxu0 0.0
    %552 = vmatprep.subr.mxu0 0.0
    %553 = vmatpush1.msra.mxu0 0.0
    %554 = vmatprep.subr.mxu0 0.0
    %555 = vmatpush1.msra.mxu0 0.0
    %556 = vmatprep.subr.mxu0 0.0
    %557 = vmatpush1.msra.mxu0 0.0
    %558 = vmatprep.subr.mxu0 0.0
    %559 = vmatpush1.msra.mxu0 0.0
    %560 = vmatprep.subr.mxu0 0.0
    %561 = vmatpush1.msra.mxu0 0.0
    %562 = vmatprep.subr.mxu0 0.0
    %563 = vmatpush1.msra.mxu0 0.0
    %564 = vmatprep.subr.mxu0 0.0
    %565 = vmatpush1.msra.mxu0 0.0
    %566 = vmatprep.subr.mxu0 0.0
    %567 = vmatpush1.msra.mxu0 0.0
    %568 = vmatprep.subr.mxu0 0.0
    %569 = vmatpush1.msra.mxu0 0.0
    %570 = vmatprep.subr.mxu0 0.0
    %571 = vmatpush1.msra.mxu0 0.0
    %572 = vmatprep.subr.mxu0 0.0
    %573 = vmatpush1.msra.mxu0 0.0
    %574 = vmatprep.subr.mxu0 0.0
    %575 = vmatpush1.msra.mxu0 0.0
    %576 = vmatprep.subr.mxu0 0.0
    %577 = vmatpush1.msra.mxu0 0.0
    %578 = vmatprep.subr.mxu0 0.0
    %579 = vmatpush1.msra.mxu0 0.0
    %580 = vmatprep.subr.mxu0 0.0
    %581 = vmatpush1.msra.mxu0 0.0
    %582 = vmatprep.subr.mxu0 0.0
    %583 = vmatpush1.msra.mxu0 0.0
    %584 = vmatprep.subr.mxu0 0.0
    %585 = vmatpush1.msra.mxu0 0.0
    %586 = vmatprep.subr.mxu0 0.0
    %587 = vmatpush1.msra.mxu0 0.0
    %588 = vmatprep.subr.mxu0 0.0
    %589 = vmatpush1.msra.mxu0 0.0
    %590 = vmatprep.subr.mxu0 0.0
    %591 = vmatpush1.msra.mxu0 0.0
    %592 = vmatprep.subr.mxu0 0.0
    %593 = vmatpush1.msra.mxu0 0.0
    %594 = vmatprep.subr.mxu0 0.0
    %595 = vmatpush1.msra.mxu0 0.0
    %596 = vmatprep.subr.mxu0 0.0
    %597 = vmatpush1.msra.mxu0 0.0
    %598 = vmatprep.mubr.f32.mxu0 0.0
    %599 = vmatmul.mubr.f32.gmra.mrb[0].mxu0 %v487
    %v600 = vpop.f32.mrb[0].mxu0
    %v601 = vadd.f32 0.0, %v600
    %v602 = vpop.f32.mrb[0].mxu0
    %603 = vmatprep.mubr.f32.mxu0 0.0
    %604 = vmatmul.mubr.f32.gmra.mrb[0].mxu0 %v490
    %v605 = vpop.f32.mrb[0].mxu0
    %v606 = vadd.f32 0.0, %v605
    %v607 = vpop.f32.mrb[0].mxu0
    %608 = vmatprep.mubr.f32.mxu0 0.0
    %609 = vmatmul.mubr.f32.gmra.mrb[0].mxu0 %v493
    %v610 = vpop.f32.mrb[0].mxu0
    %v611 = vadd.f32 0.0, %v610
    %v612 = vpop.f32.mrb[0].mxu0
    %613 = vmatprep.mubr.f32.mxu0 0.0
    %614 = vmatmul.mubr.f32.gmra.mrb[0].mxu0 %v496
    %v615 = vpop.f32.mrb[0].mxu0
    %v616 = vadd.f32 0.0, %v615
    %v617 = vpop.f32.mrb[0].mxu0
    %618 = vmatprep.mubr.f32.mxu0 0.0
    %619 = vmatmul.mubr.f32.gmra.mrb[0].mxu0 %v499
    %v620 = vpop.f32.mrb[0].mxu0
    %v621 = vadd.f32 0.0, %v620
    %v622 = vpop.f32.mrb[0].mxu0
    %623 = vmatprep.mubr.f32.mxu0 0.0
    %624 = vmatmul.mubr.f32.gmra.mrb[0].mxu0 %v502
    %v625 = vpop.f32.mrb[0].mxu0
    %v626 = vadd.f32 0.0, %v625
    %v627 = vpop.f32.mrb[0].mxu0
    %628 = vmatprep.mubr.f32.mxu0 0.0
    %629 = vmatmul.mubr.f32.gmra.mrb[0].mxu0 %v505
    %v630 = vpop.f32.mrb[0].mxu0
    %v631 = vadd.f32 0.0, %v630
    %v632 = vpop.f32.mrb[0].mxu0
    %633 = vmatprep.mubr.f32.mxu0 0.0
    %634 = vmatmul.mubr.f32.gmra.mrb[0].mxu0 %v508
    %v635 = vpop.f32.mrb[0].mxu0
    %v636 = vadd.f32 0.0, %v635
    %v637 = vpop.f32.mrb[0].mxu0
    %638 = vmatprep.mubr.f32.mxu0 0.0
    %639 = vmatmul.mubr.f32.gmra.mrb[0].mxu0 %v511
    %v640 = vpop.f32.mrb[0].mxu0
    %v641 = vadd.f32 0.0, %v640
    %v642 = vpop.f32.mrb[0].mxu0
    %643 = vmatprep.mubr.f32.mxu0 0.0
    %644 = vmatmul.mubr.f32.gmra.mrb[0].mxu0 %v514
    %v645 = vpop.f32.mrb[0].mxu0
    %v646 = vadd.f32 0.0, %v645
    %v647 = vpop.f32.mrb[0].mxu0
    %648 = vmatprep.mubr.f32.mxu0 0.0
    %649 = vmatmul.mubr.f32.gmra.mrb[0].mxu0 %v517
    %v650 = vpop.f32.mrb[0].mxu0
    %v651 = vadd.f32 0.0, %v650
    %v652 = vpop.f32.mrb[0].mxu0
    %653 = vmatprep.mubr.f32.mxu0 0.0
    %654 = vmatmul.mubr.f32.gmra.mrb[0].mxu0 %v520
    %v655 = vpop.f32.mrb[0].mxu0
    %v656 = vadd.f32 0.0, %v655
    %v657 = vpop.f32.mrb[0].mxu0
    %658 = vmatprep.mubr.f32.mxu0 0.0
    %659 = vmatmul.mubr.f32.gmra.mrb[0].mxu0 %v523
    %v660 = vpop.f32.mrb[0].mxu0
    %v661 = vadd.f32 0.0, %v660
    %v662 = vpop.f32.mrb[0].mxu0
    %663 = vmatprep.mubr.f32.mxu0 0.0
    %664 = vmatmul.mubr.f32.gmra.mrb[0].mxu0 %v526
    %v665 = vpop.f32.mrb[0].mxu0
    %v666 = vadd.f32 0.0, %v665
    %v667 = vpop.f32.mrb[0].mxu0
    %668 = vmatprep.mubr.f32.mxu0 0.0
    %669 = vmatmul.mubr.f32.gmra.mrb[0].mxu0 %v529
    %v670 = vpop.f32.mrb[0].mxu0
    %v671 = vadd.f32 0.0, %v670
    %v672 = vpop.f32.mrb[0].mxu0
    %673 = vmatprep.mubr.f32.mxu0 0.0
    %674 = vmatmul.mubr.f32.gmra.mrb[0].mxu0 %v532
    %v675 = vpop.f32.mrb[0].mxu0
    %v676 = vadd.f32 0.0, %v675
    %v677 = vpop.f32.mrb[0].mxu0
    %678 = vdwg.mxu0
    %680 = vset.pattern.permute.xlu0 0
    %681 = vperm.xlu0 %680, %v283
    %v682 = vpop.permute.xlu0 %681
    %685 = vset.pattern.permute.xlu0 0
    %686 = vperm.xlu0 %685, %v285
    %v687 = vpop.permute.xlu0 %686
    %690 = vset.pattern.permute.xlu0 0
    %691 = vperm.xlu0 %690, %v287
    %v692 = vpop.permute.xlu0 %691
    %695 = vset.pattern.permute.xlu0 0
    %696 = vperm.xlu0 %695, %v289
    %v697 = vpop.permute.xlu0 %696
    %700 = vset.pattern.permute.xlu0 0
    %701 = vperm.xlu0 %700, %v291
    %v702 = vpop.permute.xlu0 %701
    %705 = vset.pattern.permute.xlu0 0
    %706 = vperm.xlu0 %705, %v293
    %v707 = vpop.permute.xlu0 %706
    %710 = vset.pattern.permute.xlu0 0
    %711 = vperm.xlu0 %710, %v295
    %v712 = vpop.permute.xlu0 %711
    %715 = vset.pattern.permute.xlu0 0
    %716 = vperm.xlu0 %715, %v297
    %v717 = vpop.permute.xlu0 %716
    %720 = vset.pattern.permute.xlu0 0
    %721 = vperm.xlu0 %720, %v299
    %v722 = vpop.permute.xlu0 %721
    %725 = vset.pattern.permute.xlu0 0
    %726 = vperm.xlu0 %725, %v301
    %v727 = vpop.permute.xlu0 %726
    %730 = vset.pattern.permute.xlu0 0
    %731 = vperm.xlu0 %730, %v303
    %v732 = vpop.permute.xlu0 %731
    %735 = vset.pattern.permute.xlu0 0
    %736 = vperm.xlu0 %735, %v305
    %v737 = vpop.permute.xlu0 %736
    %740 = vset.pattern.permute.xlu0 0
    %741 = vperm.xlu0 %740, %v307
    %v742 = vpop.permute.xlu0 %741
    %745 = vset.pattern.permute.xlu0 0
    %746 = vperm.xlu0 %745, %v309
    %v747 = vpop.permute.xlu0 %746
    %750 = vset.pattern.permute.xlu0 0
    %751 = vperm.xlu0 %750, %v311
    %v752 = vpop.permute.xlu0 %751
    %755 = vset.pattern.permute.xlu0 0
    %756 = vperm.xlu0 %755, %v313
    %v757 = vpop.permute.xlu0 %756
    %v759 = vmul.f32 %v601, %v682
    %v760 = vmul.f32 %v606, %v687
    %v761 = vmul.f32 %v611, %v692
    %v762 = vmul.f32 %v616, %v697
    %v763 = vmul.f32 %v621, %v702
    %v764 = vmul.f32 %v626, %v707
    %v765 = vmul.f32 %v631, %v712
    %v766 = vmul.f32 %v636, %v717
    %v767 = vmul.f32 %v641, %v722
    %v768 = vmul.f32 %v646, %v727
    %v769 = vmul.f32 %v651, %v732
    %v770 = vmul.f32 %v656, %v737
    %v771 = vmul.f32 %v661, %v742
    %v772 = vmul.f32 %v666, %v747
    %v773 = vmul.f32 %v671, %v752
    %v774 = vmul.f32 %v676, %v757
    %v775 = vld [vmem:[%s4] sm:$0xff]
    %v776 = vld [vmem:[%s4 + $0x8] sm:$0xff]
    %v777 = vld [vmem:[%s4 + $0x10] sm:$0xff]
    %v778 = vld [vmem:[%s4 + $0x18] sm:$0xff]
    %v779 = vld [vmem:[%s5] sm:$0x1]
    %v781 = vlaneseq
    %v782 = vshrl.u32 %v781, 7
    %v783 = vsub.s32 0, %v782
    %v784 = vrot.slane %v779, %v783
    %v787 = vsel %vm485, %v759, 0
    %v790 = vsel %vm485, %v760, 0
    %v793 = vsel %vm485, %v761, 0
    %v796 = vsel %vm485, %v762, 0
    %v799 = vsel %vm485, %v763, 0
    %v802 = vsel %vm485, %v764, 0
    %v805 = vsel %vm485, %v765, 0
    %v808 = vsel %vm485, %v766, 0
    %v811 = vsel %vm485, %v767, 0
    %v814 = vsel %vm485, %v768, 0
    %v817 = vsel %vm485, %v769, 0
    %v820 = vsel %vm485, %v770, 0
    %v823 = vsel %vm485, %v771, 0
    %v826 = vsel %vm485, %v772, 0
    %v829 = vsel %vm485, %v773, 0
    %v832 = vsel %vm485, %v774, 0
    %834 = vmatprep.subr.mxu0 0.0
    %835 = vmatpush1.msra.mxu0 %v775
    %836 = vmatprep.subr.mxu0 0.0
    %837 = vmatpush1.msra.mxu0 %v776
    %838 = vmatprep.subr.mxu0 0.0
    %839 = vmatpush1.msra.mxu0 %v777
    %840 = vmatprep.subr.mxu0 0.0
    %841 = vmatpush1.msra.mxu0 %v778
    %842 = vmatprep.subr.mxu0 0.0
    %843 = vmatpush1.msra.mxu0 0.0
    %844 = vmatprep.subr.mxu0 0.0
    %845 = vmatpush1.msra.mxu0 0.0
    %846 = vmatprep.subr.mxu0 0.0
    %847 = vmatpush1.msra.mxu0 0.0
    %848 = vmatprep.subr.mxu0 0.0
    %849 = vmatpush1.msra.mxu0 0.0
    %850 = vmatprep.subr.mxu0 0.0
    %851 = vmatpush1.msra.mxu0 0.0
    %852 = vmatprep.subr.mxu0 0.0
    %853 = vmatpush1.msra.mxu0 0.0
    %854 = vmatprep.subr.mxu0 0.0
    %855 = vmatpush1.msra.mxu0 0.0
    %856 = vmatprep.subr.mxu0 0.0
    %857 = vmatpush1.msra.mxu0 0.0
    %858 = vmatprep.subr.mxu0 0.0
    %859 = vmatpush1.msra.mxu0 0.0
    %860 = vmatprep.subr.mxu0 0.0
    %861 = vmatpush1.msra.mxu0 0.0
    %862 = vmatprep.subr.mxu0 0.0
    %863 = vmatpush1.msra.mxu0 0.0
    %864 = vmatprep.subr.mxu0 0.0
    %865 = vmatpush1.msra.mxu0 0.0
    %866 = vmatprep.subr.mxu0 0.0
    %867 = vmatpush1.msra.mxu0 0.0
    %868 = vmatprep.subr.mxu0 0.0
    %869 = vmatpush1.msra.mxu0 0.0
    %870 = vmatprep.subr.mxu0 0.0
    %871 = vmatpush1.msra.mxu0 0.0
    %872 = vmatprep.subr.mxu0 0.0
    %873 = vmatpush1.msra.mxu0 0.0
    %874 = vmatprep.subr.mxu0 0.0
    %875 = vmatpush1.msra.mxu0 0.0
    %876 = vmatprep.subr.mxu0 0.0
    %877 = vmatpush1.msra.mxu0 0.0
    %878 = vmatprep.subr.mxu0 0.0
    %879 = vmatpush1.msra.mxu0 0.0
    %880 = vmatprep.subr.mxu0 0.0
    %881 = vmatpush1.msra.mxu0 0.0
    %882 = vmatprep.subr.mxu0 0.0
    %883 = vmatpush1.msra.mxu0 0.0
    %884 = vmatprep.subr.mxu0 0.0
    %885 = vmatpush1.msra.mxu0 0.0
    %886 = vmatprep.subr.mxu0 0.0
    %887 = vmatpush1.msra.mxu0 0.0
    %888 = vmatprep.subr.mxu0 0.0
    %889 = vmatpush1.msra.mxu0 0.0
    %890 = vmatprep.subr.mxu0 0.0
    %891 = vmatpush1.msra.mxu0 0.0
    %892 = vmatprep.subr.mxu0 0.0
    %893 = vmatpush1.msra.mxu0 0.0
    %894 = vmatprep.subr.mxu0 0.0
    %895 = vmatpush1.msra.mxu0 0.0
    %896 = vmatprep.subr.mxu0 0.0
    %897 = vmatpush1.msra.mxu0 0.0
    %898 = vmatprep.mubr.f32.mxu0 0.0
    %899 = vmatmul.mubr.f32.gmra.mrb[0].mxu0 %v787
    %v900 = vpop.f32.mrb[0].mxu0
    %v901 = vadd.f32 %v784, %v900
    %v902 = vpop.f32.mrb[0].mxu0
    %903 = vmatprep.mubr.f32.mxu0 0.0
    %904 = vmatmul.mubr.f32.gmra.mrb[0].mxu0 %v790
    %v905 = vpop.f32.mrb[0].mxu0
    %v906 = vadd.f32 %v784, %v905
    %v907 = vpop.f32.mrb[0].mxu0
    %908 = vmatprep.mubr.f32.mxu0 0.0
    %909 = vmatmul.mubr.f32.gmra.mrb[0].mxu0 %v793
    %v910 = vpop.f32.mrb[0].mxu0
    %v911 = vadd.f32 %v784, %v910
    %v912 = vpop.f32.mrb[0].mxu0
    %913 = vmatprep.mubr.f32.mxu0 0.0
    %914 = vmatmul.mubr.f32.gmra.mrb[0].mxu0 %v796
    %v915 = vpop.f32.mrb[0].mxu0
    %v916 = vadd.f32 %v784, %v915
    %v917 = vpop.f32.mrb[0].mxu0
    %918 = vmatprep.mubr.f32.mxu0 0.0
    %919 = vmatmul.mubr.f32.gmra.mrb[0].mxu0 %v799
    %v920 = vpop.f32.mrb[0].mxu0
    %v921 = vadd.f32 %v784, %v920
    %v922 = vpop.f32.mrb[0].mxu0
    %923 = vmatprep.mubr.f32.mxu0 0.0
    %924 = vmatmul.mubr.f32.gmra.mrb[0].mxu0 %v802
    %v925 = vpop.f32.mrb[0].mxu0
    %v926 = vadd.f32 %v784, %v925
    %v927 = vpop.f32.mrb[0].mxu0
    %928 = vmatprep.mubr.f32.mxu0 0.0
    %929 = vmatmul.mubr.f32.gmra.mrb[0].mxu0 %v805
    %v930 = vpop.f32.mrb[0].mxu0
    %v931 = vadd.f32 %v784, %v930
    %v932 = vpop.f32.mrb[0].mxu0
    %933 = vmatprep.mubr.f32.mxu0 0.0
    %934 = vmatmul.mubr.f32.gmra.mrb[0].mxu0 %v808
    %v935 = vpop.f32.mrb[0].mxu0
    %v936 = vadd.f32 %v784, %v935
    %v937 = vpop.f32.mrb[0].mxu0
    %938 = vmatprep.mubr.f32.mxu0 0.0
    %939 = vmatmul.mubr.f32.gmra.mrb[0].mxu0 %v811
    %v940 = vpop.f32.mrb[0].mxu0
    %v941 = vadd.f32 %v784, %v940
    %v942 = vpop.f32.mrb[0].mxu0
    %943 = vmatprep.mubr.f32.mxu0 0.0
    %944 = vmatmul.mubr.f32.gmra.mrb[0].mxu0 %v814
    %v945 = vpop.f32.mrb[0].mxu0
    %v946 = vadd.f32 %v784, %v945
    %v947 = vpop.f32.mrb[0].mxu0
    %948 = vmatprep.mubr.f32.mxu0 0.0
    %949 = vmatmul.mubr.f32.gmra.mrb[0].mxu0 %v817
    %v950 = vpop.f32.mrb[0].mxu0
    %v951 = vadd.f32 %v784, %v950
    %v952 = vpop.f32.mrb[0].mxu0
    %953 = vmatprep.mubr.f32.mxu0 0.0
    %954 = vmatmul.mubr.f32.gmra.mrb[0].mxu0 %v820
    %v955 = vpop.f32.mrb[0].mxu0
    %v956 = vadd.f32 %v784, %v955
    %v957 = vpop.f32.mrb[0].mxu0
    %958 = vmatprep.mubr.f32.mxu0 0.0
    %959 = vmatmul.mubr.f32.gmra.mrb[0].mxu0 %v823
    %v960 = vpop.f32.mrb[0].mxu0
    %v961 = vadd.f32 %v784, %v960
    %v962 = vpop.f32.mrb[0].mxu0
    %963 = vmatprep.mubr.f32.mxu0 0.0
    %964 = vmatmul.mubr.f32.gmra.mrb[0].mxu0 %v826
    %v965 = vpop.f32.mrb[0].mxu0
    %v966 = vadd.f32 %v784, %v965
    %v967 = vpop.f32.mrb[0].mxu0
    %968 = vmatprep.mubr.f32.mxu0 0.0
    %969 = vmatmul.mubr.f32.gmra.mrb[0].mxu0 %v829
    %v970 = vpop.f32.mrb[0].mxu0
    %v971 = vadd.f32 %v784, %v970
    %v972 = vpop.f32.mrb[0].mxu0
    %973 = vmatprep.mubr.f32.mxu0 0.0
    %974 = vmatmul.mubr.f32.gmra.mrb[0].mxu0 %v832
    %v975 = vpop.f32.mrb[0].mxu0
    %v976 = vadd.f32 %v784, %v975
    %v977 = vpop.f32.mrb[0].mxu0
    %978 = vdwg.mxu0
    %979 = vst [vmem:[#allocation2] sm:$0xff] %v901
    %980 = vst [vmem:[#allocation2 + $0x8] sm:$0xff] %v906
    %981 = vst [vmem:[#allocation2 + $0x10] sm:$0xff] %v911
    %982 = vst [vmem:[#allocation2 + $0x18] sm:$0xff] %v916
    %983 = vst [vmem:[#allocation2 + $0x20] sm:$0xff] %v921
    %984 = vst [vmem:[#allocation2 + $0x28] sm:$0xff] %v926
    %985 = vst [vmem:[#allocation2 + $0x30] sm:$0xff] %v931
    %986 = vst [vmem:[#allocation2 + $0x38] sm:$0xff] %v936
    %987 = vst [vmem:[#allocation2 + $0x40] sm:$0xff] %v941
    %988 = vst [vmem:[#allocation2 + $0x48] sm:$0xff] %v946
    %989 = vst [vmem:[#allocation2 + $0x50] sm:$0xff] %v951
    %990 = vst [vmem:[#allocation2 + $0x58] sm:$0xff] %v956
    %991 = vst [vmem:[#allocation2 + $0x60] sm:$0xff] %v961
    %992 = vst [vmem:[#allocation2 + $0x68] sm:$0xff] %v966
    %993 = vst [vmem:[#allocation2 + $0x70] sm:$0xff] %v971
    %994 = vst [vmem:[#allocation2 + $0x78] sm:$0xff] %v976
    // Predicated region
    $region26: #{tpu_custom_call.1} parent=1 // pred_check
      _
    $region27: #{tpu_custom_call.1} parent=1 // pred_check_branch
      %996 = sbr.rel (0) target = $region29
    $region28: #{tpu_custom_call.1} parent=1 // pred_region
      %s998 = ssub.s32 2048, 2048
      %999 = vsyncadd [#allocation3], %s998
      %s1000 = sshll.u32 [#allocation2], 4
      %s1001 = int_to_ptr.vmem [resolvable:$true] %s1000
      %1006 = dma.vmem_to_hbm [thread:$0]  %s1001, 2048, %s6, [#allocation3], 128, 128, 8
    $region29: #{tpu_custom_call.1} parent=1 // pred_fallthru
      _
    // Predicated region
    $region30: #{tpu_custom_call.1} parent=1 // pred_check
      _
    $region31: #{tpu_custom_call.1} parent=1 // pred_check_branch
      %1008 = sbr.rel (0) target = $region33
    $region32: #{tpu_custom_call.1} parent=1 // pred_region
      %1009 = dma.done [#allocation3], 2048
    $region33: #{tpu_custom_call.1} parent=1 // pred_fallthru
      _
    %1010 = vsyncpa [#allocation3], 1

</llo_original>
